<compile_context>
chip_gen: v5e
topology: v5e:2x2
jax: 0.10.0
libtpu: 0.0.40
codegen_flags: <defaults>
</compile_context>

<pallas_src>
import math

import numpy as np
import jax
import jax.numpy as jnp
from jax.experimental import pallas as pl
from jax.experimental.pallas import tpu as pltpu


def _bilinear_up2_matrix(n_in: int) -> np.ndarray:
    """(2*n_in, n_in) matrix implementing bilinear x2 upsample, align_corners=True."""
    n_out = 2 * n_in
    A = np.zeros((n_out, n_in), dtype=np.float32)
    for i in range(n_out):
        src = i * (n_in - 1) / (n_out - 1) if n_out > 1 else 0.0
        i0 = min(int(math.floor(src)), n_in - 1)
        f = src - i0
        A[i, i0] += 1.0 - f
        if i0 + 1 < n_in:
            A[i, i0 + 1] += f
    return A


def _up2_taps(n_in: int):
    """Per output row i: (src_row, w_src, w_src_plus_1) for x2 align_corners."""
    n_out = 2 * n_in
    taps = []
    for i in range(n_out):
        src = i * (n_in - 1) / (n_out - 1) if n_out > 1 else 0.0
        i0 = min(int(math.floor(src)), n_in - 1)
        f = src - i0
        w1 = f if (i0 + 1 < n_in and f > 0.0) else 0.0
        taps.append((i0, 1.0 - f, w1))
    return taps


def _build_conv_body(C1, W, H2, W2, W2p, L, h_taps):
    """Shared per-image body: bilinear x2 upsample + 1x1 conv + add + 3x3 conv.

    Layout: sublanes = channels, lanes = flattened spatial.
    Returns the bias-free conv output acc: (COUT, L) with L = H2*W2p
    (2 garbage lanes per padded row, masked/compacted by the caller)."""

    def conv_body(up_ref, x_ref, awt_ref, w1_ref, b1_ref, w3f_ref, pad_ref, tap_ref):
        # Zero the whole padded scratch once (halo rows/cols + spill lanes);
        # re-done every grid step so the batch axis stays "parallel"-safe.
        pad_ref[...] = jnp.zeros_like(pad_ref)

        # Hoisted 1x1 conv over the whole image: (C1,C2)@(C2,H2*W2), lane dense.
        xc = jnp.dot(w1_ref[...], x_ref[...],
                     preferred_element_type=jnp.float32) + b1_ref[...]

        awt = awt_ref[...]                                 # (W, W2)
        # Bilinear x2 upsample: per output row a 2-tap height FMA (static
        # weights) + one (C1,W)@(W,W2) width matmul; store only the W2-wide
        # interior of the padded row (halo columns stay zero).
        # TODO(synk): for large H2 switch to lax.fori_loop(..., unroll=8) with
        # pl.ds/pl.multiple_of row offsets (+ a spatial row-block grid axis).
        for i in range(H2):
            h0, wa, wb = h_taps[i]
            r = wa * up_ref[:, h0 * W:(h0 + 1) * W]
            if wb != 0.0:
                r = r + wb * up_ref[:, (h0 + 1) * W:(h0 + 2) * W]
            upr = jnp.dot(r, awt, preferred_element_type=jnp.float32)   # (C1, W2)
            base = (i + 1) * W2p + 1
            pad_ref[:, base:base + W2] = upr + xc[:, i * W2:(i + 1) * W2]

        # 3x3 conv (pad=1) as ONE MXU matmul: stack the 9 lane-shifted taps on
        # sublanes (K = 9*C1) and contract against the tap-fused weight.
        for t in range(9):
            dy, dx = divmod(t, 3)
            off = dy * W2p + dx
            tap_ref[t * C1:(t + 1) * C1, :] = pad_ref[:, off:off + L]
        return jnp.dot(w3f_ref[...], tap_ref[...],
                       preferred_element_type=jnp.float32)              # (COUT, L)

    return conv_body


def _make_stats_kernel(C1, W, H2, W2, W2p, L, h_taps):
    conv_body = _build_conv_body(C1, W, H2, W2, W2p, L, h_taps)
    inv_w2p = 1.0 / float(W2p)

    def kernel(up_ref, x_ref, awt_ref, w1_ref, b1_ref, w3f_ref,
               stats_ref, pad_ref, tap_ref):
        acc = conv_body(up_ref, x_ref, awt_ref, w1_ref, b1_ref, w3f_ref,
                        pad_ref, tap_ref)
        # In-kernel valid-lane mask (drops the 2 gap lanes of every padded
        # row); float iota + floor avoids vector integer mod, no mask DMA.
        lane = jax.lax.broadcasted_iota(jnp.int32, (1, L), 1).astype(jnp.float32)
        row = jnp.floor((lane + 0.5) * inv_w2p)
        col = lane - row * float(W2p)
        accm = acc * (col < (W2 - 0.5)).astype(jnp.float32)
        # Partial per-channel sums of the bias-free conv output.
        stats_ref[...] = jnp.concatenate(
            [jnp.sum(accm, axis=1, keepdims=True),
             jnp.sum(accm * accm, axis=1, keepdims=True)], axis=1)      # (COUT, 2)

    return kernel


def _make_apply_kernel(C1, W, H2, W2, W2p, L, h_taps):
    conv_body = _build_conv_body(C1, W, H2, W2, W2p, L, h_taps)

    def kernel(up_ref, x_ref, awt_ref, w1_ref, b1_ref, w3f_ref,
               scale_ref, shift_ref, out_ref, pad_ref, tap_ref):
        acc = conv_body(up_ref, x_ref, awt_ref, w1_ref, b1_ref, w3f_ref,
                        pad_ref, tap_ref)
        z = jnp.maximum(acc * scale_ref[...] + shift_ref[...], 0.0)     # (COUT, L)
        # Compact the padded-width rows into a lane-dense (COUT, H2*W2) output.
        for i in range(H2):
            out_ref[:, i * W2:(i + 1) * W2] = z[:, i * W2p:i * W2p + W2]

    return kernel


def unet_block_forward(up_p, x_p, params):
    """up_p: (N, C1, H, W), x_p: (N, C2, 2H, 2W), NCHW float32 (PyTorch layout)."""
    w3_pt = params["x_conv_w"]    # (COUT, C1, 3, 3)
    w1_pt = params["x_conv__w"]   # (C1, C2, 1, 1)
    b1 = params["x_conv__b"]      # (C1,)
    gamma = params["bn_w"]        # (COUT,)
    beta = params["bn_b"]         # (COUT,)
    # NOTE: the 3x3 conv bias (x_conv_b) cancels exactly under training-mode
    # BatchNorm (absorbed by the batch-mean subtraction) -> never enters kernels.

    N, C1, H, W = up_p.shape
    _, C2, H2, W2 = x_p.shape
    COUT = w3_pt.shape[0]
    assert (H2, W2) == (2 * H, 2 * W)
    W2p = W2 + 2                  # padded row width (2 halo columns)
    Hp = H2 + 2
    L = H2 * W2p                  # padded-width flattened spatial length
    PADL = Hp * W2p + 8           # +8 spill lanes so the dy=2,dx=2 tap of the
                                  # last garbage column never reads OOB

    # --- glue: free reshapes + tiny constant prep, no HBM transposes --------
    up_wide = up_p.reshape(N, C1, H * W)
    x_wide = x_p.reshape(N, C2, H2 * W2)

    AwT = jnp.asarray(_bilinear_up2_matrix(W).T)                       # (W, W2)
    h_taps = _up2_taps(H)

    w1 = w1_pt[:, :, 0, 0]                                             # (C1, C2)
    b1c = b1.reshape(C1, 1)
    # Tap-fused 3x3 weight: column (t*C1 + c) pairs with tap t = 3*dy+dx of
    # input channel c in the tap-stacked scratch.
    w3f = jnp.transpose(w3_pt, (0, 2, 3, 1)).reshape(COUT, 9 * C1)     # (COUT, 9*C1)

    # Per-step VMEM (double-buffered IO + scratch) with 2x headroom, capped at
    # 48 MiB so the same tile also fits v7x (64 MiB physical per TensorCore).
    est = 4 * (2 * (C1 * H * W + C2 * H2 * W2 + COUT * H2 * W2 + 2 * COUT)
               + W * W2 + C1 * C2 + C1 + 9 * COUT * C1
               + C1 * PADL + 9 * C1 * L)
    vmem_limit = int(min(max(2 * est, 16 * 2 ** 20), 48 * 2 ** 20))

    common_in_specs = [
        pl.BlockSpec((None, C1, H * W), lambda n: (n, 0, 0)),          # up (wide)
        pl.BlockSpec((None, C2, H2 * W2), lambda n: (n, 0, 0)),        # x  (wide)
        pl.BlockSpec((W, W2), lambda n: (0, 0)),                       # AwT
        pl.BlockSpec((C1, C2), lambda n: (0, 0)),                      # 1x1 weight
        pl.BlockSpec((C1, 1), lambda n: (0, 0)),                       # 1x1 bias
        pl.BlockSpec((COUT, 9 * C1), lambda n: (0, 0)),                # fused 3x3 w
    ]
    scratch = [pltpu.VMEM((C1, PADL), jnp.float32),                    # padded image
               pltpu.VMEM((9 * C1, L), jnp.float32)]                   # tap stack
    cparams = pltpu.CompilerParams(dimension_semantics=("parallel",),
                                   vmem_limit_bytes=vmem_limit)
    # TODO(synk): add a second "parallel" grid axis (COUT / H2-row block) so
    # both v7x TensorCores are busy when N is 1 or odd.

    # --- pass 1: fused conv -> per-image BN partial statistics only ---------
    stats = pl.pallas_call(
        _make_stats_kernel(C1, W, H2, W2, W2p, L, h_taps),
        out_shape=jax.ShapeDtypeStruct((N, COUT, 2), jnp.float32),
        grid=(N,),
        in_specs=common_in_specs,
        out_specs=pl.BlockSpec((None, COUT, 2), lambda n: (n, 0, 0)),
        scratch_shapes=scratch,
        compiler_params=cparams,
    )(up_wide, x_wide, AwT, w1, b1c, w3f)

    # --- tiny cross-batch reduction + BN scale/shift algebra (plain JAX) ----
    cnt = float(N * H2 * W2)
    mean = jnp.sum(stats[:, :, 0], axis=0) / cnt                       # E[conv]
    var = jnp.maximum(jnp.sum(stats[:, :, 1], axis=0) / cnt - mean * mean, 0.0)
    scale = gamma * jax.lax.rsqrt(var + 1e-5)                          # biased var
    shift = beta - mean * scale
    # TODO(synk): training-mode BN also updates running_mean/running_var
    # buffers; only the forward output is reproduced here.

    # --- pass 2: recompute conv (cheaper than an HBM round trip of y),
    #     apply BN scale/shift + ReLU, write lane-dense compact output -------
    out_flat = pl.pallas_call(
        _make_apply_kernel(C1, W, H2, W2, W2p, L, h_taps),
        out_shape=jax.ShapeDtypeStruct((N, COUT, H2 * W2), jnp.float32),
        grid=(N,),
        in_specs=common_in_specs + [
            pl.BlockSpec((COUT, 1), lambda n: (0, 0)),                 # BN scale
            pl.BlockSpec((COUT, 1), lambda n: (0, 0)),                 # BN shift
        ],
        out_specs=pl.BlockSpec((None, COUT, H2 * W2), lambda n: (n, 0, 0)),
        scratch_shapes=scratch,
        compiler_params=cparams,
    )(up_wide, x_wide, AwT, w1, b1c, w3f,
      scale.reshape(COUT, 1), shift.reshape(COUT, 1))

    return out_flat.reshape(N, COUT, H2, W2)   # NCHW, free reshape


def reference_forward(up_p, x_p, params):
    """Pure-JAX reference (same math, standard lax ops) for verification."""
    w3_pt, b3 = params["x_conv_w"], params["x_conv_b"]
    w1_pt, b1 = params["x_conv__w"], params["x_conv__b"]
    gamma, beta = params["bn_w"], params["bn_b"]
    N, C1, H, W = up_p.shape
    Ah = jnp.asarray(_bilinear_up2_matrix(H))
    Aw = jnp.asarray(_bilinear_up2_matrix(W))
    up2 = jnp.einsum("ih,jw,nchw->ncij", Ah, Aw, up_p)
    xc = jax.lax.conv_general_dilated(
        x_p, w1_pt, (1, 1), "VALID",
        dimension_numbers=("NCHW", "OIHW", "NCHW")) + b1[None, :, None, None]
    s = up2 + xc
    y = jax.lax.conv_general_dilated(
        s, w3_pt, (1, 1), ((1, 1), (1, 1)),
        dimension_numbers=("NCHW", "OIHW", "NCHW")) + b3[None, :, None, None]
    m = y.mean(axis=(0, 2, 3), keepdims=True)
    v = ((y - m) ** 2).mean(axis=(0, 2, 3), keepdims=True)
    yhat = (y - m) * jax.lax.rsqrt(v + 1e-5)
    return jnp.maximum(yhat * gamma[None, :, None, None] + beta[None, :, None, None], 0.0)


if __name__ == "__main__":
    # up_in1 = 4, up_in2 = 8, up_out = 16
    N, C1, C2, COUT = 2, 4, 8, 16
    H = W = 8

    keys = jax.random.split(jax.random.PRNGKey(0), 6)

    # Deterministic synthetic parameters matching the PyTorch init semantics:
    # xavier_normal_ for conv weights, default uniform for conv biases,
    # BN weight = 1, BN bias = 0.
    std3 = math.sqrt(2.0 / (C1 * 9 + COUT * 9))
    std1 = math.sqrt(2.0 / (C2 * 1 + C1 * 1))
    params = {
        "x_conv_w": std3 * jax.random.normal(keys[0], (COUT, C1, 3, 3), jnp.float32),
        "x_conv_b": jax.random.uniform(keys[1], (COUT,), jnp.float32,
                                       -1.0 / math.sqrt(C1 * 9), 1.0 / math.sqrt(C1 * 9)),
        "x_conv__w": std1 * jax.random.normal(keys[2], (C1, C2, 1, 1), jnp.float32),
        "x_conv__b": jax.random.uniform(keys[3], (C1,), jnp.float32,
                                        -1.0 / math.sqrt(C2), 1.0 / math.sqrt(C2)),
        "bn_w": jnp.ones((COUT,), jnp.float32),
        "bn_b": jnp.zeros((COUT,), jnp.float32),
    }

    up_p = jax.random.normal(keys[4], (N, C1, H, W), jnp.float32)         # decoder feature
    x_p = jax.random.normal(keys[5], (N, C2, 2 * H, 2 * W), jnp.float32)  # skip connection

    out = jax.block_until_ready(unet_block_forward(up_p, x_p, params))
    ref = jax.block_until_ready(reference_forward(up_p, x_p, params))

    assert out.shape == (N, COUT, 2 * H, 2 * W), out.shape
    max_err = float(jnp.max(jnp.abs(out - ref)))
    assert max_err < 5e-4, f"mismatch vs reference: {max_err}"
    print("KERNEL_OK")
</pallas_src>

<mosaic_0001>
module attributes {stable_mosaic.version = 11 : i64} {
  func.func @kernel(%arg0: i32, %arg1: memref<1x4x64xf32, #tpu.memory_space<vmem>>, %arg2: memref<1x8x256xf32, #tpu.memory_space<vmem>>, %arg3: memref<8x16xf32, #tpu.memory_space<vmem>>, %arg4: memref<4x8xf32, #tpu.memory_space<vmem>>, %arg5: memref<4x1xf32, #tpu.memory_space<vmem>>, %arg6: memref<16x36xf32, #tpu.memory_space<vmem>>, %arg7: memref<1x16x2xf32, #tpu.memory_space<vmem>>, %arg8: memref<4x332xf32, #tpu.memory_space<vmem>>, %arg9: memref<36x288xf32, #tpu.memory_space<vmem>>) attributes {dimension_semantics = [#tpu.dimension_semantics<parallel>], iteration_bounds = array<i64: 2>, scalar_prefetch = 0 : i64, scratch_operands = 2 : i64, tpu.core_type = #tpu.core_type<tc>, window_params = [{transform_indices = @transform_0, window_bounds = array<i64: 1, 4, 64>}, {transform_indices = @transform_1, window_bounds = array<i64: 1, 8, 256>}, {pipeline_mode = #tpu.pipeline_mode<synchronous>, transform_indices = @transform_2, window_bounds = array<i64: 8, 16>}, {pipeline_mode = #tpu.pipeline_mode<synchronous>, transform_indices = @transform_3, window_bounds = array<i64: 4, 8>}, {pipeline_mode = #tpu.pipeline_mode<synchronous>, transform_indices = @transform_4, window_bounds = array<i64: 4, 1>}, {pipeline_mode = #tpu.pipeline_mode<synchronous>, transform_indices = @transform_5, window_bounds = array<i64: 16, 36>}, {transform_indices = @transform_6, window_bounds = array<i64: 1, 16, 2>}]} {
    %cst = arith.constant 0.000000e+00 : f32
    %0 = vector.broadcast %cst : f32 to vector<4x332xf32>
    %c0 = arith.constant 0 : index
    %c0_0 = arith.constant 0 : index
    %1 = vector.load %arg8[%c0, %c0_0] : memref<4x332xf32, #tpu.memory_space<vmem>>, vector<4x332xf32>
    tpu.vector_store %arg8[%c0, %c0_0], %0 {strides = array<i32>} : memref<4x332xf32, #tpu.memory_space<vmem>>, vector<4x332xf32>,
    %c0_1 = arith.constant 0 : index
    %c0_2 = arith.constant 0 : index
    %2 = vector.load %arg4[%c0_1, %c0_2] : memref<4x8xf32, #tpu.memory_space<vmem>>, vector<4x8xf32>
    %c0_3 = arith.constant 0 : index
    %c0_4 = arith.constant 0 : index
    %c0_5 = arith.constant 0 : index
    %3 = vector.load %arg2[%c0_3, %c0_4, %c0_5] : memref<1x8x256xf32, #tpu.memory_space<vmem>>, vector<1x8x256xf32>
    %4 = vector.shape_cast %3 : vector<1x8x256xf32> to vector<8x256xf32>
    %cst_6 = arith.constant dense<0.000000e+00> : vector<4x256xf32>
    %5 = tpu.matmul %2, %4, %cst_6 {dimension_numbers = #tpu.dot_dimension_numbers<[1], [0], [0], [1], [0, 0, 1, 1], [], []>} : vector<4x8xf32>, vector<8x256xf32>, vector<4x256xf32> -> vector<4x256xf32>
    %c0_7 = arith.constant 0 : index
    %c0_8 = arith.constant 0 : index
    %6 = vector.load %arg5[%c0_7, %c0_8] : memref<4x1xf32, #tpu.memory_space<vmem>>, vector<4x1xf32>
    %7 = vector.broadcast %6 : vector<4x1xf32> to vector<4x256xf32>
    %8 = arith.addf %5, %7 : vector<4x256xf32>
    %c0_9 = arith.constant 0 : index
    %c0_10 = arith.constant 0 : index
    %9 = vector.load %arg3[%c0_9, %c0_10] : memref<8x16xf32, #tpu.memory_space<vmem>>, vector<8x16xf32>
    %c0_11 = arith.constant 0 : index
    %c0_12 = arith.constant 0 : index
    %c0_13 = arith.constant 0 : index
    %10 = vector.load %arg1[%c0_11, %c0_12, %c0_13] : memref<1x4x64xf32, #tpu.memory_space<vmem>>, vector<1x4x8xf32>
    %11 = vector.shape_cast %10 : vector<1x4x8xf32> to vector<4x8xf32>
    %cst_14 = arith.constant 1.000000e+00 : f32
    %12 = vector.broadcast %cst_14 : f32 to vector<4x8xf32>
    %13 = arith.mulf %12, %11 : vector<4x8xf32>
    %cst_15 = arith.constant dense<0.000000e+00> : vector<4x16xf32>
    %14 = tpu.matmul %13, %9, %cst_15 {dimension_numbers = #tpu.dot_dimension_numbers<[1], [0], [0], [1], [0, 0, 1, 1], [], []>} : vector<4x8xf32>, vector<8x16xf32>, vector<4x16xf32> -> vector<4x16xf32>
    %15 = vector.extract_strided_slice %8 {offsets = [0, 0], sizes = [4, 16], strides = [1, 1]} : vector<4x256xf32> to vector<4x16xf32>
    %16 = arith.addf %14, %15 : vector<4x16xf32>
    %c0_16 = arith.constant 0 : index
    %c19 = arith.constant 19 : index
    %17 = vector.load %arg8[%c0_16, %c19] : memref<4x332xf32, #tpu.memory_space<vmem>>, vector<4x16xf32>
    tpu.vector_store %arg8[%c0_16, %c19], %16 {strides = array<i32>} : memref<4x332xf32, #tpu.memory_space<vmem>>, vector<4x16xf32>,
    %c0_17 = arith.constant 0 : index
    %c0_18 = arith.constant 0 : index
    %c0_19 = arith.constant 0 : index
    %18 = vector.load %arg1[%c0_17, %c0_18, %c0_19] : memref<1x4x64xf32, #tpu.memory_space<vmem>>, vector<1x4x8xf32>
    %19 = vector.shape_cast %18 : vector<1x4x8xf32> to vector<4x8xf32>
    %cst_20 = arith.constant 0.533333361 : f32
    %20 = vector.broadcast %cst_20 : f32 to vector<4x8xf32>
    %21 = arith.mulf %20, %19 : vector<4x8xf32>
    %c0_21 = arith.constant 0 : index
    %c0_22 = arith.constant 0 : index
    %c8 = arith.constant 8 : index
    %22 = vector.load %arg1[%c0_21, %c0_22, %c8] : memref<1x4x64xf32, #tpu.memory_space<vmem>>, vector<1x4x8xf32>
    %23 = vector.shape_cast %22 : vector<1x4x8xf32> to vector<4x8xf32>
    %cst_23 = arith.constant 0.466666669 : f32
    %24 = vector.broadcast %cst_23 : f32 to vector<4x8xf32>
    %25 = arith.mulf %24, %23 : vector<4x8xf32>
    %26 = arith.addf %21, %25 : vector<4x8xf32>
    %cst_24 = arith.constant dense<0.000000e+00> : vector<4x16xf32>
    %27 = tpu.matmul %26, %9, %cst_24 {dimension_numbers = #tpu.dot_dimension_numbers<[1], [0], [0], [1], [0, 0, 1, 1], [], []>} : vector<4x8xf32>, vector<8x16xf32>, vector<4x16xf32> -> vector<4x16xf32>
    %28 = vector.extract_strided_slice %8 {offsets = [0, 16], sizes = [4, 16], strides = [1, 1]} : vector<4x256xf32> to vector<4x16xf32>
    %29 = arith.addf %27, %28 : vector<4x16xf32>
    %c0_25 = arith.constant 0 : index
    %c37 = arith.constant 37 : index
    %30 = vector.load %arg8[%c0_25, %c37] : memref<4x332xf32, #tpu.memory_space<vmem>>, vector<4x16xf32>
    tpu.vector_store %arg8[%c0_25, %c37], %29 {strides = array<i32>} : memref<4x332xf32, #tpu.memory_space<vmem>>, vector<4x16xf32>,
    %c0_26 = arith.constant 0 : index
    %c0_27 = arith.constant 0 : index
    %c0_28 = arith.constant 0 : index
    %31 = vector.load %arg1[%c0_26, %c0_27, %c0_28] : memref<1x4x64xf32, #tpu.memory_space<vmem>>, vector<1x4x8xf32>
    %32 = vector.shape_cast %31 : vector<1x4x8xf32> to vector<4x8xf32>
    %cst_29 = arith.constant 0.0666666701 : f32
    %33 = vector.broadcast %cst_29 : f32 to vector<4x8xf32>
    %34 = arith.mulf %33, %32 : vector<4x8xf32>
    %c0_30 = arith.constant 0 : index
    %c0_31 = arith.constant 0 : index
    %c8_32 = arith.constant 8 : index
    %35 = vector.load %arg1[%c0_30, %c0_31, %c8_32] : memref<1x4x64xf32, #tpu.memory_space<vmem>>, vector<1x4x8xf32>
    %36 = vector.shape_cast %35 : vector<1x4x8xf32> to vector<4x8xf32>
    %cst_33 = arith.constant 0.933333337 : f32
    %37 = vector.broadcast %cst_33 : f32 to vector<4x8xf32>
    %38 = arith.mulf %37, %36 : vector<4x8xf32>
    %39 = arith.addf %34, %38 : vector<4x8xf32>
    %cst_34 = arith.constant dense<0.000000e+00> : vector<4x16xf32>
    %40 = tpu.matmul %39, %9, %cst_34 {dimension_numbers = #tpu.dot_dimension_numbers<[1], [0], [0], [1], [0, 0, 1, 1], [], []>} : vector<4x8xf32>, vector<8x16xf32>, vector<4x16xf32> -> vector<4x16xf32>
    %41 = vector.extract_strided_slice %8 {offsets = [0, 32], sizes = [4, 16], strides = [1, 1]} : vector<4x256xf32> to vector<4x16xf32>
    %42 = arith.addf %40, %41 : vector<4x16xf32>
    %c0_35 = arith.constant 0 : index
    %c55 = arith.constant 55 : index
    %43 = vector.load %arg8[%c0_35, %c55] : memref<4x332xf32, #tpu.memory_space<vmem>>, vector<4x16xf32>
    tpu.vector_store %arg8[%c0_35, %c55], %42 {strides = array<i32>} : memref<4x332xf32, #tpu.memory_space<vmem>>, vector<4x16xf32>,
    %c0_36 = arith.constant 0 : index
    %c0_37 = arith.constant 0 : index
    %c8_38 = arith.constant 8 : index
    %44 = vector.load %arg1[%c0_36, %c0_37, %c8_38] : memref<1x4x64xf32, #tpu.memory_space<vmem>>, vector<1x4x8xf32>
    %45 = vector.shape_cast %44 : vector<1x4x8xf32> to vector<4x8xf32>
    %cst_39 = arith.constant 6.000000e-01 : f32
    %46 = vector.broadcast %cst_39 : f32 to vector<4x8xf32>
    %47 = arith.mulf %46, %45 : vector<4x8xf32>
    %c0_40 = arith.constant 0 : index
    %c0_41 = arith.constant 0 : index
    %c16 = arith.constant 16 : index
    %48 = vector.load %arg1[%c0_40, %c0_41, %c16] : memref<1x4x64xf32, #tpu.memory_space<vmem>>, vector<1x4x8xf32>
    %49 = vector.shape_cast %48 : vector<1x4x8xf32> to vector<4x8xf32>
    %cst_42 = arith.constant 4.000000e-01 : f32
    %50 = vector.broadcast %cst_42 : f32 to vector<4x8xf32>
    %51 = arith.mulf %50, %49 : vector<4x8xf32>
    %52 = arith.addf %47, %51 : vector<4x8xf32>
    %cst_43 = arith.constant dense<0.000000e+00> : vector<4x16xf32>
    %53 = tpu.matmul %52, %9, %cst_43 {dimension_numbers = #tpu.dot_dimension_numbers<[1], [0], [0], [1], [0, 0, 1, 1], [], []>} : vector<4x8xf32>, vector<8x16xf32>, vector<4x16xf32> -> vector<4x16xf32>
    %54 = vector.extract_strided_slice %8 {offsets = [0, 48], sizes = [4, 16], strides = [1, 1]} : vector<4x256xf32> to vector<4x16xf32>
    %55 = arith.addf %53, %54 : vector<4x16xf32>
    %c0_44 = arith.constant 0 : index
    %c73 = arith.constant 73 : index
    %56 = vector.load %arg8[%c0_44, %c73] : memref<4x332xf32, #tpu.memory_space<vmem>>, vector<4x16xf32>
    tpu.vector_store %arg8[%c0_44, %c73], %55 {strides = array<i32>} : memref<4x332xf32, #tpu.memory_space<vmem>>, vector<4x16xf32>,
    %c0_45 = arith.constant 0 : index
    %c0_46 = arith.constant 0 : index
    %c8_47 = arith.constant 8 : index
    %57 = vector.load %arg1[%c0_45, %c0_46, %c8_47] : memref<1x4x64xf32, #tpu.memory_space<vmem>>, vector<1x4x8xf32>
    %58 = vector.shape_cast %57 : vector<1x4x8xf32> to vector<4x8xf32>
    %cst_48 = arith.constant 0.13333334 : f32
    %59 = vector.broadcast %cst_48 : f32 to vector<4x8xf32>
    %60 = arith.mulf %59, %58 : vector<4x8xf32>
    %c0_49 = arith.constant 0 : index
    %c0_50 = arith.constant 0 : index
    %c16_51 = arith.constant 16 : index
    %61 = vector.load %arg1[%c0_49, %c0_50, %c16_51] : memref<1x4x64xf32, #tpu.memory_space<vmem>>, vector<1x4x8xf32>
    %62 = vector.shape_cast %61 : vector<1x4x8xf32> to vector<4x8xf32>
    %cst_52 = arith.constant 0.866666674 : f32
    %63 = vector.broadcast %cst_52 : f32 to vector<4x8xf32>
    %64 = arith.mulf %63, %62 : vector<4x8xf32>
    %65 = arith.addf %60, %64 : vector<4x8xf32>
    %cst_53 = arith.constant dense<0.000000e+00> : vector<4x16xf32>
    %66 = tpu.matmul %65, %9, %cst_53 {dimension_numbers = #tpu.dot_dimension_numbers<[1], [0], [0], [1], [0, 0, 1, 1], [], []>} : vector<4x8xf32>, vector<8x16xf32>, vector<4x16xf32> -> vector<4x16xf32>
    %67 = vector.extract_strided_slice %8 {offsets = [0, 64], sizes = [4, 16], strides = [1, 1]} : vector<4x256xf32> to vector<4x16xf32>
    %68 = arith.addf %66, %67 : vector<4x16xf32>
    %c0_54 = arith.constant 0 : index
    %c91 = arith.constant 91 : index
    %69 = vector.load %arg8[%c0_54, %c91] : memref<4x332xf32, #tpu.memory_space<vmem>>, vector<4x16xf32>
    tpu.vector_store %arg8[%c0_54, %c91], %68 {strides = array<i32>} : memref<4x332xf32, #tpu.memory_space<vmem>>, vector<4x16xf32>,
    %c0_55 = arith.constant 0 : index
    %c0_56 = arith.constant 0 : index
    %c16_57 = arith.constant 16 : index
    %70 = vector.load %arg1[%c0_55, %c0_56, %c16_57] : memref<1x4x64xf32, #tpu.memory_space<vmem>>, vector<1x4x8xf32>
    %71 = vector.shape_cast %70 : vector<1x4x8xf32> to vector<4x8xf32>
    %cst_58 = arith.constant 0.666666686 : f32
    %72 = vector.broadcast %cst_58 : f32 to vector<4x8xf32>
    %73 = arith.mulf %72, %71 : vector<4x8xf32>
    %c0_59 = arith.constant 0 : index
    %c0_60 = arith.constant 0 : index
    %c24 = arith.constant 24 : index
    %74 = vector.load %arg1[%c0_59, %c0_60, %c24] : memref<1x4x64xf32, #tpu.memory_space<vmem>>, vector<1x4x8xf32>
    %75 = vector.shape_cast %74 : vector<1x4x8xf32> to vector<4x8xf32>
    %cst_61 = arith.constant 0.333333343 : f32
    %76 = vector.broadcast %cst_61 : f32 to vector<4x8xf32>
    %77 = arith.mulf %76, %75 : vector<4x8xf32>
    %78 = arith.addf %73, %77 : vector<4x8xf32>
    %cst_62 = arith.constant dense<0.000000e+00> : vector<4x16xf32>
    %79 = tpu.matmul %78, %9, %cst_62 {dimension_numbers = #tpu.dot_dimension_numbers<[1], [0], [0], [1], [0, 0, 1, 1], [], []>} : vector<4x8xf32>, vector<8x16xf32>, vector<4x16xf32> -> vector<4x16xf32>
    %80 = vector.extract_strided_slice %8 {offsets = [0, 80], sizes = [4, 16], strides = [1, 1]} : vector<4x256xf32> to vector<4x16xf32>
    %81 = arith.addf %79, %80 : vector<4x16xf32>
    %c0_63 = arith.constant 0 : index
    %c109 = arith.constant 109 : index
    %82 = vector.load %arg8[%c0_63, %c109] : memref<4x332xf32, #tpu.memory_space<vmem>>, vector<4x16xf32>
    tpu.vector_store %arg8[%c0_63, %c109], %81 {strides = array<i32>} : memref<4x332xf32, #tpu.memory_space<vmem>>, vector<4x16xf32>,
    %c0_64 = arith.constant 0 : index
    %c0_65 = arith.constant 0 : index
    %c16_66 = arith.constant 16 : index
    %83 = vector.load %arg1[%c0_64, %c0_65, %c16_66] : memref<1x4x64xf32, #tpu.memory_space<vmem>>, vector<1x4x8xf32>
    %84 = vector.shape_cast %83 : vector<1x4x8xf32> to vector<4x8xf32>
    %cst_67 = arith.constant 2.000000e-01 : f32
    %85 = vector.broadcast %cst_67 : f32 to vector<4x8xf32>
    %86 = arith.mulf %85, %84 : vector<4x8xf32>
    %c0_68 = arith.constant 0 : index
    %c0_69 = arith.constant 0 : index
    %c24_70 = arith.constant 24 : index
    %87 = vector.load %arg1[%c0_68, %c0_69, %c24_70] : memref<1x4x64xf32, #tpu.memory_space<vmem>>, vector<1x4x8xf32>
    %88 = vector.shape_cast %87 : vector<1x4x8xf32> to vector<4x8xf32>
    %cst_71 = arith.constant 8.000000e-01 : f32
    %89 = vector.broadcast %cst_71 : f32 to vector<4x8xf32>
    %90 = arith.mulf %89, %88 : vector<4x8xf32>
    %91 = arith.addf %86, %90 : vector<4x8xf32>
    %cst_72 = arith.constant dense<0.000000e+00> : vector<4x16xf32>
    %92 = tpu.matmul %91, %9, %cst_72 {dimension_numbers = #tpu.dot_dimension_numbers<[1], [0], [0], [1], [0, 0, 1, 1], [], []>} : vector<4x8xf32>, vector<8x16xf32>, vector<4x16xf32> -> vector<4x16xf32>
    %93 = vector.extract_strided_slice %8 {offsets = [0, 96], sizes = [4, 16], strides = [1, 1]} : vector<4x256xf32> to vector<4x16xf32>
    %94 = arith.addf %92, %93 : vector<4x16xf32>
    %c0_73 = arith.constant 0 : index
    %c127 = arith.constant 127 : index
    %95 = vector.load %arg8[%c0_73, %c127] : memref<4x332xf32, #tpu.memory_space<vmem>>, vector<4x16xf32>
    tpu.vector_store %arg8[%c0_73, %c127], %94 {strides = array<i32>} : memref<4x332xf32, #tpu.memory_space<vmem>>, vector<4x16xf32>,
    %c0_74 = arith.constant 0 : index
    %c0_75 = arith.constant 0 : index
    %c24_76 = arith.constant 24 : index
    %96 = vector.load %arg1[%c0_74, %c0_75, %c24_76] : memref<1x4x64xf32, #tpu.memory_space<vmem>>, vector<1x4x8xf32>
    %97 = vector.shape_cast %96 : vector<1x4x8xf32> to vector<4x8xf32>
    %cst_77 = arith.constant 0.733333349 : f32
    %98 = vector.broadcast %cst_77 : f32 to vector<4x8xf32>
    %99 = arith.mulf %98, %97 : vector<4x8xf32>
    %c0_78 = arith.constant 0 : index
    %c0_79 = arith.constant 0 : index
    %c32 = arith.constant 32 : index
    %100 = vector.load %arg1[%c0_78, %c0_79, %c32] : memref<1x4x64xf32, #tpu.memory_space<vmem>>, vector<1x4x8xf32>
    %101 = vector.shape_cast %100 : vector<1x4x8xf32> to vector<4x8xf32>
    %cst_80 = arith.constant 0.266666681 : f32
    %102 = vector.broadcast %cst_80 : f32 to vector<4x8xf32>
    %103 = arith.mulf %102, %101 : vector<4x8xf32>
    %104 = arith.addf %99, %103 : vector<4x8xf32>
    %cst_81 = arith.constant dense<0.000000e+00> : vector<4x16xf32>
    %105 = tpu.matmul %104, %9, %cst_81 {dimension_numbers = #tpu.dot_dimension_numbers<[1], [0], [0], [1], [0, 0, 1, 1], [], []>} : vector<4x8xf32>, vector<8x16xf32>, vector<4x16xf32> -> vector<4x16xf32>
    %106 = vector.extract_strided_slice %8 {offsets = [0, 112], sizes = [4, 16], strides = [1, 1]} : vector<4x256xf32> to vector<4x16xf32>
    %107 = arith.addf %105, %106 : vector<4x16xf32>
    %c0_82 = arith.constant 0 : index
    %c145 = arith.constant 145 : index
    %108 = vector.load %arg8[%c0_82, %c145] : memref<4x332xf32, #tpu.memory_space<vmem>>, vector<4x16xf32>
    tpu.vector_store %arg8[%c0_82, %c145], %107 {strides = array<i32>} : memref<4x332xf32, #tpu.memory_space<vmem>>, vector<4x16xf32>,
    %c0_83 = arith.constant 0 : index
    %c0_84 = arith.constant 0 : index
    %c24_85 = arith.constant 24 : index
    %109 = vector.load %arg1[%c0_83, %c0_84, %c24_85] : memref<1x4x64xf32, #tpu.memory_space<vmem>>, vector<1x4x8xf32>
    %110 = vector.shape_cast %109 : vector<1x4x8xf32> to vector<4x8xf32>
    %cst_86 = arith.constant 0.266666681 : f32
    %111 = vector.broadcast %cst_86 : f32 to vector<4x8xf32>
    %112 = arith.mulf %111, %110 : vector<4x8xf32>
    %c0_87 = arith.constant 0 : index
    %c0_88 = arith.constant 0 : index
    %c32_89 = arith.constant 32 : index
    %113 = vector.load %arg1[%c0_87, %c0_88, %c32_89] : memref<1x4x64xf32, #tpu.memory_space<vmem>>, vector<1x4x8xf32>
    %114 = vector.shape_cast %113 : vector<1x4x8xf32> to vector<4x8xf32>
    %cst_90 = arith.constant 0.733333349 : f32
    %115 = vector.broadcast %cst_90 : f32 to vector<4x8xf32>
    %116 = arith.mulf %115, %114 : vector<4x8xf32>
    %117 = arith.addf %112, %116 : vector<4x8xf32>
    %cst_91 = arith.constant dense<0.000000e+00> : vector<4x16xf32>
    %118 = tpu.matmul %117, %9, %cst_91 {dimension_numbers = #tpu.dot_dimension_numbers<[1], [0], [0], [1], [0, 0, 1, 1], [], []>} : vector<4x8xf32>, vector<8x16xf32>, vector<4x16xf32> -> vector<4x16xf32>
    %119 = vector.extract_strided_slice %8 {offsets = [0, 128], sizes = [4, 16], strides = [1, 1]} : vector<4x256xf32> to vector<4x16xf32>
    %120 = arith.addf %118, %119 : vector<4x16xf32>
    %c0_92 = arith.constant 0 : index
    %c163 = arith.constant 163 : index
    %121 = vector.load %arg8[%c0_92, %c163] : memref<4x332xf32, #tpu.memory_space<vmem>>, vector<4x16xf32>
    tpu.vector_store %arg8[%c0_92, %c163], %120 {strides = array<i32>} : memref<4x332xf32, #tpu.memory_space<vmem>>, vector<4x16xf32>,
    %c0_93 = arith.constant 0 : index
    %c0_94 = arith.constant 0 : index
    %c32_95 = arith.constant 32 : index
    %122 = vector.load %arg1[%c0_93, %c0_94, %c32_95] : memref<1x4x64xf32, #tpu.memory_space<vmem>>, vector<1x4x8xf32>
    %123 = vector.shape_cast %122 : vector<1x4x8xf32> to vector<4x8xf32>
    %cst_96 = arith.constant 8.000000e-01 : f32
    %124 = vector.broadcast %cst_96 : f32 to vector<4x8xf32>
    %125 = arith.mulf %124, %123 : vector<4x8xf32>
    %c0_97 = arith.constant 0 : index
    %c0_98 = arith.constant 0 : index
    %c40 = arith.constant 40 : index
    %126 = vector.load %arg1[%c0_97, %c0_98, %c40] : memref<1x4x64xf32, #tpu.memory_space<vmem>>, vector<1x4x8xf32>
    %127 = vector.shape_cast %126 : vector<1x4x8xf32> to vector<4x8xf32>
    %cst_99 = arith.constant 2.000000e-01 : f32
    %128 = vector.broadcast %cst_99 : f32 to vector<4x8xf32>
    %129 = arith.mulf %128, %127 : vector<4x8xf32>
    %130 = arith.addf %125, %129 : vector<4x8xf32>
    %cst_100 = arith.constant dense<0.000000e+00> : vector<4x16xf32>
    %131 = tpu.matmul %130, %9, %cst_100 {dimension_numbers = #tpu.dot_dimension_numbers<[1], [0], [0], [1], [0, 0, 1, 1], [], []>} : vector<4x8xf32>, vector<8x16xf32>, vector<4x16xf32> -> vector<4x16xf32>
    %132 = vector.extract_strided_slice %8 {offsets = [0, 144], sizes = [4, 16], strides = [1, 1]} : vector<4x256xf32> to vector<4x16xf32>
    %133 = arith.addf %131, %132 : vector<4x16xf32>
    %c0_101 = arith.constant 0 : index
    %c181 = arith.constant 181 : index
    %134 = vector.load %arg8[%c0_101, %c181] : memref<4x332xf32, #tpu.memory_space<vmem>>, vector<4x16xf32>
    tpu.vector_store %arg8[%c0_101, %c181], %133 {strides = array<i32>} : memref<4x332xf32, #tpu.memory_space<vmem>>, vector<4x16xf32>,
    %c0_102 = arith.constant 0 : index
    %c0_103 = arith.constant 0 : index
    %c32_104 = arith.constant 32 : index
    %135 = vector.load %arg1[%c0_102, %c0_103, %c32_104] : memref<1x4x64xf32, #tpu.memory_space<vmem>>, vector<1x4x8xf32>
    %136 = vector.shape_cast %135 : vector<1x4x8xf32> to vector<4x8xf32>
    %cst_105 = arith.constant 0.333333343 : f32
    %137 = vector.broadcast %cst_105 : f32 to vector<4x8xf32>
    %138 = arith.mulf %137, %136 : vector<4x8xf32>
    %c0_106 = arith.constant 0 : index
    %c0_107 = arith.constant 0 : index
    %c40_108 = arith.constant 40 : index
    %139 = vector.load %arg1[%c0_106, %c0_107, %c40_108] : memref<1x4x64xf32, #tpu.memory_space<vmem>>, vector<1x4x8xf32>
    %140 = vector.shape_cast %139 : vector<1x4x8xf32> to vector<4x8xf32>
    %cst_109 = arith.constant 0.666666686 : f32
    %141 = vector.broadcast %cst_109 : f32 to vector<4x8xf32>
    %142 = arith.mulf %141, %140 : vector<4x8xf32>
    %143 = arith.addf %138, %142 : vector<4x8xf32>
    %cst_110 = arith.constant dense<0.000000e+00> : vector<4x16xf32>
    %144 = tpu.matmul %143, %9, %cst_110 {dimension_numbers = #tpu.dot_dimension_numbers<[1], [0], [0], [1], [0, 0, 1, 1], [], []>} : vector<4x8xf32>, vector<8x16xf32>, vector<4x16xf32> -> vector<4x16xf32>
    %145 = vector.extract_strided_slice %8 {offsets = [0, 160], sizes = [4, 16], strides = [1, 1]} : vector<4x256xf32> to vector<4x16xf32>
    %146 = arith.addf %144, %145 : vector<4x16xf32>
    %c0_111 = arith.constant 0 : index
    %c199 = arith.constant 199 : index
    %147 = vector.load %arg8[%c0_111, %c199] : memref<4x332xf32, #tpu.memory_space<vmem>>, vector<4x16xf32>
    tpu.vector_store %arg8[%c0_111, %c199], %146 {strides = array<i32>} : memref<4x332xf32, #tpu.memory_space<vmem>>, vector<4x16xf32>,
    %c0_112 = arith.constant 0 : index
    %c0_113 = arith.constant 0 : index
    %c40_114 = arith.constant 40 : index
    %148 = vector.load %arg1[%c0_112, %c0_113, %c40_114] : memref<1x4x64xf32, #tpu.memory_space<vmem>>, vector<1x4x8xf32>
    %149 = vector.shape_cast %148 : vector<1x4x8xf32> to vector<4x8xf32>
    %cst_115 = arith.constant 0.866666674 : f32
    %150 = vector.broadcast %cst_115 : f32 to vector<4x8xf32>
    %151 = arith.mulf %150, %149 : vector<4x8xf32>
    %c0_116 = arith.constant 0 : index
    %c0_117 = arith.constant 0 : index
    %c48 = arith.constant 48 : index
    %152 = vector.load %arg1[%c0_116, %c0_117, %c48] : memref<1x4x64xf32, #tpu.memory_space<vmem>>, vector<1x4x8xf32>
    %153 = vector.shape_cast %152 : vector<1x4x8xf32> to vector<4x8xf32>
    %cst_118 = arith.constant 0.13333334 : f32
    %154 = vector.broadcast %cst_118 : f32 to vector<4x8xf32>
    %155 = arith.mulf %154, %153 : vector<4x8xf32>
    %156 = arith.addf %151, %155 : vector<4x8xf32>
    %cst_119 = arith.constant dense<0.000000e+00> : vector<4x16xf32>
    %157 = tpu.matmul %156, %9, %cst_119 {dimension_numbers = #tpu.dot_dimension_numbers<[1], [0], [0], [1], [0, 0, 1, 1], [], []>} : vector<4x8xf32>, vector<8x16xf32>, vector<4x16xf32> -> vector<4x16xf32>
    %158 = vector.extract_strided_slice %8 {offsets = [0, 176], sizes = [4, 16], strides = [1, 1]} : vector<4x256xf32> to vector<4x16xf32>
    %159 = arith.addf %157, %158 : vector<4x16xf32>
    %c0_120 = arith.constant 0 : index
    %c217 = arith.constant 217 : index
    %160 = vector.load %arg8[%c0_120, %c217] : memref<4x332xf32, #tpu.memory_space<vmem>>, vector<4x16xf32>
    tpu.vector_store %arg8[%c0_120, %c217], %159 {strides = array<i32>} : memref<4x332xf32, #tpu.memory_space<vmem>>, vector<4x16xf32>,
    %c0_121 = arith.constant 0 : index
    %c0_122 = arith.constant 0 : index
    %c40_123 = arith.constant 40 : index
    %161 = vector.load %arg1[%c0_121, %c0_122, %c40_123] : memref<1x4x64xf32, #tpu.memory_space<vmem>>, vector<1x4x8xf32>
    %162 = vector.shape_cast %161 : vector<1x4x8xf32> to vector<4x8xf32>
    %cst_124 = arith.constant 4.000000e-01 : f32
    %163 = vector.broadcast %cst_124 : f32 to vector<4x8xf32>
    %164 = arith.mulf %163, %162 : vector<4x8xf32>
    %c0_125 = arith.constant 0 : index
    %c0_126 = arith.constant 0 : index
    %c48_127 = arith.constant 48 : index
    %165 = vector.load %arg1[%c0_125, %c0_126, %c48_127] : memref<1x4x64xf32, #tpu.memory_space<vmem>>, vector<1x4x8xf32>
    %166 = vector.shape_cast %165 : vector<1x4x8xf32> to vector<4x8xf32>
    %cst_128 = arith.constant 6.000000e-01 : f32
    %167 = vector.broadcast %cst_128 : f32 to vector<4x8xf32>
    %168 = arith.mulf %167, %166 : vector<4x8xf32>
    %169 = arith.addf %164, %168 : vector<4x8xf32>
    %cst_129 = arith.constant dense<0.000000e+00> : vector<4x16xf32>
    %170 = tpu.matmul %169, %9, %cst_129 {dimension_numbers = #tpu.dot_dimension_numbers<[1], [0], [0], [1], [0, 0, 1, 1], [], []>} : vector<4x8xf32>, vector<8x16xf32>, vector<4x16xf32> -> vector<4x16xf32>
    %171 = vector.extract_strided_slice %8 {offsets = [0, 192], sizes = [4, 16], strides = [1, 1]} : vector<4x256xf32> to vector<4x16xf32>
    %172 = arith.addf %170, %171 : vector<4x16xf32>
    %c0_130 = arith.constant 0 : index
    %c235 = arith.constant 235 : index
    %173 = vector.load %arg8[%c0_130, %c235] : memref<4x332xf32, #tpu.memory_space<vmem>>, vector<4x16xf32>
    tpu.vector_store %arg8[%c0_130, %c235], %172 {strides = array<i32>} : memref<4x332xf32, #tpu.memory_space<vmem>>, vector<4x16xf32>,
    %c0_131 = arith.constant 0 : index
    %c0_132 = arith.constant 0 : index
    %c48_133 = arith.constant 48 : index
    %174 = vector.load %arg1[%c0_131, %c0_132, %c48_133] : memref<1x4x64xf32, #tpu.memory_space<vmem>>, vector<1x4x8xf32>
    %175 = vector.shape_cast %174 : vector<1x4x8xf32> to vector<4x8xf32>
    %cst_134 = arith.constant 0.933333337 : f32
    %176 = vector.broadcast %cst_134 : f32 to vector<4x8xf32>
    %177 = arith.mulf %176, %175 : vector<4x8xf32>
    %c0_135 = arith.constant 0 : index
    %c0_136 = arith.constant 0 : index
    %c56 = arith.constant 56 : index
    %178 = vector.load %arg1[%c0_135, %c0_136, %c56] : memref<1x4x64xf32, #tpu.memory_space<vmem>>, vector<1x4x8xf32>
    %179 = vector.shape_cast %178 : vector<1x4x8xf32> to vector<4x8xf32>
    %cst_137 = arith.constant 0.0666666701 : f32
    %180 = vector.broadcast %cst_137 : f32 to vector<4x8xf32>
    %181 = arith.mulf %180, %179 : vector<4x8xf32>
    %182 = arith.addf %177, %181 : vector<4x8xf32>
    %cst_138 = arith.constant dense<0.000000e+00> : vector<4x16xf32>
    %183 = tpu.matmul %182, %9, %cst_138 {dimension_numbers = #tpu.dot_dimension_numbers<[1], [0], [0], [1], [0, 0, 1, 1], [], []>} : vector<4x8xf32>, vector<8x16xf32>, vector<4x16xf32> -> vector<4x16xf32>
    %184 = vector.extract_strided_slice %8 {offsets = [0, 208], sizes = [4, 16], strides = [1, 1]} : vector<4x256xf32> to vector<4x16xf32>
    %185 = arith.addf %183, %184 : vector<4x16xf32>
    %c0_139 = arith.constant 0 : index
    %c253 = arith.constant 253 : index
    %186 = vector.load %arg8[%c0_139, %c253] : memref<4x332xf32, #tpu.memory_space<vmem>>, vector<4x16xf32>
    tpu.vector_store %arg8[%c0_139, %c253], %185 {strides = array<i32>} : memref<4x332xf32, #tpu.memory_space<vmem>>, vector<4x16xf32>,
    %c0_140 = arith.constant 0 : index
    %c0_141 = arith.constant 0 : index
    %c48_142 = arith.constant 48 : index
    %187 = vector.load %arg1[%c0_140, %c0_141, %c48_142] : memref<1x4x64xf32, #tpu.memory_space<vmem>>, vector<1x4x8xf32>
    %188 = vector.shape_cast %187 : vector<1x4x8xf32> to vector<4x8xf32>
    %cst_143 = arith.constant 0.466666669 : f32
    %189 = vector.broadcast %cst_143 : f32 to vector<4x8xf32>
    %190 = arith.mulf %189, %188 : vector<4x8xf32>
    %c0_144 = arith.constant 0 : index
    %c0_145 = arith.constant 0 : index
    %c56_146 = arith.constant 56 : index
    %191 = vector.load %arg1[%c0_144, %c0_145, %c56_146] : memref<1x4x64xf32, #tpu.memory_space<vmem>>, vector<1x4x8xf32>
    %192 = vector.shape_cast %191 : vector<1x4x8xf32> to vector<4x8xf32>
    %cst_147 = arith.constant 0.533333361 : f32
    %193 = vector.broadcast %cst_147 : f32 to vector<4x8xf32>
    %194 = arith.mulf %193, %192 : vector<4x8xf32>
    %195 = arith.addf %190, %194 : vector<4x8xf32>
    %cst_148 = arith.constant dense<0.000000e+00> : vector<4x16xf32>
    %196 = tpu.matmul %195, %9, %cst_148 {dimension_numbers = #tpu.dot_dimension_numbers<[1], [0], [0], [1], [0, 0, 1, 1], [], []>} : vector<4x8xf32>, vector<8x16xf32>, vector<4x16xf32> -> vector<4x16xf32>
    %197 = vector.extract_strided_slice %8 {offsets = [0, 224], sizes = [4, 16], strides = [1, 1]} : vector<4x256xf32> to vector<4x16xf32>
    %198 = arith.addf %196, %197 : vector<4x16xf32>
    %c0_149 = arith.constant 0 : index
    %c271 = arith.constant 271 : index
    %199 = vector.load %arg8[%c0_149, %c271] : memref<4x332xf32, #tpu.memory_space<vmem>>, vector<4x16xf32>
    tpu.vector_store %arg8[%c0_149, %c271], %198 {strides = array<i32>} : memref<4x332xf32, #tpu.memory_space<vmem>>, vector<4x16xf32>,
    %c0_150 = arith.constant 0 : index
    %c0_151 = arith.constant 0 : index
    %c56_152 = arith.constant 56 : index
    %200 = vector.load %arg1[%c0_150, %c0_151, %c56_152] : memref<1x4x64xf32, #tpu.memory_space<vmem>>, vector<1x4x8xf32>
    %201 = vector.shape_cast %200 : vector<1x4x8xf32> to vector<4x8xf32>
    %cst_153 = arith.constant 1.000000e+00 : f32
    %202 = vector.broadcast %cst_153 : f32 to vector<4x8xf32>
    %203 = arith.mulf %202, %201 : vector<4x8xf32>
    %cst_154 = arith.constant dense<0.000000e+00> : vector<4x16xf32>
    %204 = tpu.matmul %203, %9, %cst_154 {dimension_numbers = #tpu.dot_dimension_numbers<[1], [0], [0], [1], [0, 0, 1, 1], [], []>} : vector<4x8xf32>, vector<8x16xf32>, vector<4x16xf32> -> vector<4x16xf32>
    %205 = vector.extract_strided_slice %8 {offsets = [0, 240], sizes = [4, 16], strides = [1, 1]} : vector<4x256xf32> to vector<4x16xf32>
    %206 = arith.addf %204, %205 : vector<4x16xf32>
    %c0_155 = arith.constant 0 : index
    %c289 = arith.constant 289 : index
    %207 = vector.load %arg8[%c0_155, %c289] : memref<4x332xf32, #tpu.memory_space<vmem>>, vector<4x16xf32>
    tpu.vector_store %arg8[%c0_155, %c289], %206 {strides = array<i32>} : memref<4x332xf32, #tpu.memory_space<vmem>>, vector<4x16xf32>,
    %c0_156 = arith.constant 0 : index
    %c0_157 = arith.constant 0 : index
    %208 = vector.load %arg8[%c0_156, %c0_157] : memref<4x332xf32, #tpu.memory_space<vmem>>, vector<4x288xf32>
    %c0_158 = arith.constant 0 : index
    %c0_159 = arith.constant 0 : index
    %209 = vector.load %arg9[%c0_158, %c0_159] : memref<36x288xf32, #tpu.memory_space<vmem>>, vector<4x288xf32>
    tpu.vector_store %arg9[%c0_158, %c0_159], %208 {strides = array<i32>} : memref<36x288xf32, #tpu.memory_space<vmem>>, vector<4x288xf32>,
    %c0_160 = arith.constant 0 : index
    %c1 = arith.constant 1 : index
    %210 = vector.load %arg8[%c0_160, %c1] : memref<4x332xf32, #tpu.memory_space<vmem>>, vector<4x288xf32>
    %c4 = arith.constant 4 : index
    %c0_161 = arith.constant 0 : index
    %211 = vector.load %arg9[%c4, %c0_161] : memref<36x288xf32, #tpu.memory_space<vmem>>, vector<4x288xf32>
    tpu.vector_store %arg9[%c4, %c0_161], %210 {strides = array<i32>} : memref<36x288xf32, #tpu.memory_space<vmem>>, vector<4x288xf32>,
    %c0_162 = arith.constant 0 : index
    %c2 = arith.constant 2 : index
    %212 = vector.load %arg8[%c0_162, %c2] : memref<4x332xf32, #tpu.memory_space<vmem>>, vector<4x288xf32>
    %c8_163 = arith.constant 8 : index
    %c0_164 = arith.constant 0 : index
    %213 = vector.load %arg9[%c8_163, %c0_164] : memref<36x288xf32, #tpu.memory_space<vmem>>, vector<4x288xf32>
    tpu.vector_store %arg9[%c8_163, %c0_164], %212 {strides = array<i32>} : memref<36x288xf32, #tpu.memory_space<vmem>>, vector<4x288xf32>,
    %c0_165 = arith.constant 0 : index
    %c18 = arith.constant 18 : index
    %214 = vector.load %arg8[%c0_165, %c18] : memref<4x332xf32, #tpu.memory_space<vmem>>, vector<4x288xf32>
    %c12 = arith.constant 12 : index
    %c0_166 = arith.constant 0 : index
    %215 = vector.load %arg9[%c12, %c0_166] : memref<36x288xf32, #tpu.memory_space<vmem>>, vector<4x288xf32>
    tpu.vector_store %arg9[%c12, %c0_166], %214 {strides = array<i32>} : memref<36x288xf32, #tpu.memory_space<vmem>>, vector<4x288xf32>,
    %c0_167 = arith.constant 0 : index
    %c19_168 = arith.constant 19 : index
    %216 = vector.load %arg8[%c0_167, %c19_168] : memref<4x332xf32, #tpu.memory_space<vmem>>, vector<4x288xf32>
    %c16_169 = arith.constant 16 : index
    %c0_170 = arith.constant 0 : index
    %217 = vector.load %arg9[%c16_169, %c0_170] : memref<36x288xf32, #tpu.memory_space<vmem>>, vector<4x288xf32>
    tpu.vector_store %arg9[%c16_169, %c0_170], %216 {strides = array<i32>} : memref<36x288xf32, #tpu.memory_space<vmem>>, vector<4x288xf32>,
    %c0_171 = arith.constant 0 : index
    %c20 = arith.constant 20 : index
    %218 = vector.load %arg8[%c0_171, %c20] : memref<4x332xf32, #tpu.memory_space<vmem>>, vector<4x288xf32>
    %c20_172 = arith.constant 20 : index
    %c0_173 = arith.constant 0 : index
    %219 = vector.load %arg9[%c20_172, %c0_173] : memref<36x288xf32, #tpu.memory_space<vmem>>, vector<4x288xf32>
    tpu.vector_store %arg9[%c20_172, %c0_173], %218 {strides = array<i32>} : memref<36x288xf32, #tpu.memory_space<vmem>>, vector<4x288xf32>,
    %c0_174 = arith.constant 0 : index
    %c36 = arith.constant 36 : index
    %220 = vector.load %arg8[%c0_174, %c36] : memref<4x332xf32, #tpu.memory_space<vmem>>, vector<4x288xf32>
    %c24_175 = arith.constant 24 : index
    %c0_176 = arith.constant 0 : index
    %221 = vector.load %arg9[%c24_175, %c0_176] : memref<36x288xf32, #tpu.memory_space<vmem>>, vector<4x288xf32>
    tpu.vector_store %arg9[%c24_175, %c0_176], %220 {strides = array<i32>} : memref<36x288xf32, #tpu.memory_space<vmem>>, vector<4x288xf32>,
    %c0_177 = arith.constant 0 : index
    %c37_178 = arith.constant 37 : index
    %222 = vector.load %arg8[%c0_177, %c37_178] : memref<4x332xf32, #tpu.memory_space<vmem>>, vector<4x288xf32>
    %c28 = arith.constant 28 : index
    %c0_179 = arith.constant 0 : index
    %223 = vector.load %arg9[%c28, %c0_179] : memref<36x288xf32, #tpu.memory_space<vmem>>, vector<4x288xf32>
    tpu.vector_store %arg9[%c28, %c0_179], %222 {strides = array<i32>} : memref<36x288xf32, #tpu.memory_space<vmem>>, vector<4x288xf32>,
    %c0_180 = arith.constant 0 : index
    %c38 = arith.constant 38 : index
    %224 = vector.load %arg8[%c0_180, %c38] : memref<4x332xf32, #tpu.memory_space<vmem>>, vector<4x288xf32>
    %c32_181 = arith.constant 32 : index
    %c0_182 = arith.constant 0 : index
    %225 = vector.load %arg9[%c32_181, %c0_182] : memref<36x288xf32, #tpu.memory_space<vmem>>, vector<4x288xf32>
    tpu.vector_store %arg9[%c32_181, %c0_182], %224 {strides = array<i32>} : memref<36x288xf32, #tpu.memory_space<vmem>>, vector<4x288xf32>,
    %c0_183 = arith.constant 0 : index
    %c0_184 = arith.constant 0 : index
    %226 = vector.load %arg6[%c0_183, %c0_184] : memref<16x36xf32, #tpu.memory_space<vmem>>, vector<16x36xf32>
    %c0_185 = arith.constant 0 : index
    %c0_186 = arith.constant 0 : index
    %227 = vector.load %arg9[%c0_185, %c0_186] : memref<36x288xf32, #tpu.memory_space<vmem>>, vector<36x288xf32>
    %cst_187 = arith.constant dense<0.000000e+00> : vector<16x288xf32>
    %228 = tpu.matmul %226, %227, %cst_187 {dimension_numbers = #tpu.dot_dimension_numbers<[1], [0], [0], [1], [0, 0, 1, 1], [], []>} : vector<16x36xf32>, vector<36x288xf32>, vector<16x288xf32> -> vector<16x288xf32>
    %229 = tpu.iota {dimensions = array<i32: 1>} : vector<1x288xi32>
    %230 = arith.sitofp %229 : vector<1x288xi32> to vector<1x288xf32>
    %cst_188 = arith.constant 5.000000e-01 : f32
    %231 = vector.broadcast %cst_188 : f32 to vector<1x288xf32>
    %232 = arith.addf %230, %231 : vector<1x288xf32>
    %cst_189 = arith.constant 0.055555556 : f32
    %233 = vector.broadcast %cst_189 : f32 to vector<1x288xf32>
    %234 = arith.mulf %232, %233 : vector<1x288xf32>
    %235 = math.floor %234 : vector<1x288xf32>
    %cst_190 = arith.constant 1.800000e+01 : f32
    %236 = vector.broadcast %cst_190 : f32 to vector<1x288xf32>
    %237 = arith.mulf %235, %236 : vector<1x288xf32>
    %238 = arith.subf %230, %237 : vector<1x288xf32>
    %cst_191 = arith.constant 1.550000e+01 : f32
    %239 = vector.broadcast %cst_191 : f32 to vector<1x288xf32>
    %240 = arith.cmpf olt, %238, %239 : vector<1x288xf32>
    %241 = arith.extui %240 : vector<1x288xi1> to vector<1x288xi32>
    %242 = arith.sitofp %241 : vector<1x288xi32> to vector<1x288xf32>
    %243 = vector.broadcast %242 : vector<1x288xf32> to vector<16x288xf32>
    %244 = arith.mulf %228, %243 : vector<16x288xf32>
    %cst_192 = arith.constant dense<0.000000e+00> : vector<16xf32>
    %245 = vector.multi_reduction <add>, %244, %cst_192 [1] : vector<16x288xf32> to vector<16xf32>
    %246 = vector.shape_cast %245 : vector<16xf32> to vector<16x1xf32>
    %247 = arith.mulf %244, %244 : vector<16x288xf32>
    %cst_193 = arith.constant dense<0.000000e+00> : vector<16xf32>
    %248 = vector.multi_reduction <add>, %247, %cst_193 [1] : vector<16x288xf32> to vector<16xf32>
    %249 = vector.shape_cast %248 : vector<16xf32> to vector<16x1xf32>
    %250 = tpu.concatenate %246, %249 in 1 : vector<16x1xf32>, vector<16x1xf32> -> vector<16x2xf32>
    %c0_194 = arith.constant 0 : index
    %c0_195 = arith.constant 0 : index
    %c0_196 = arith.constant 0 : index
    %251 = vector.load %arg7[%c0_194, %c0_195, %c0_196] : memref<1x16x2xf32, #tpu.memory_space<vmem>>, vector<1x16x2xf32>
    %252 = vector.shape_cast %251 : vector<1x16x2xf32> to vector<16x2xf32>
    %253 = vector.shape_cast %250 : vector<16x2xf32> to vector<1x16x2xf32>
    tpu.vector_store %arg7[%c0_194, %c0_195, %c0_196], %253 {strides = array<i32>} : memref<1x16x2xf32, #tpu.memory_space<vmem>>, vector<1x16x2xf32>,
    return
  }
  func.func @transform_0(%arg0: i32) -> (i32, i32, i32) {
    %c0_i32 = arith.constant 0 : i32
    %c0_i32_0 = arith.constant 0 : i32
    %c0_i32_1 = arith.constant 0 : i32
    return %arg0, %c0_i32, %c0_i32_0 : i32, i32, i32
  }
  func.func @transform_1(%arg0: i32) -> (i32, i32, i32) {
    %c0_i32 = arith.constant 0 : i32
    %c0_i32_0 = arith.constant 0 : i32
    %c0_i32_1 = arith.constant 0 : i32
    return %arg0, %c0_i32, %c0_i32_0 : i32, i32, i32
  }
  func.func @transform_2(%arg0: i32) -> (i32, i32) {
    %c0_i32 = arith.constant 0 : i32
    %c0_i32_0 = arith.constant 0 : i32
    %c0_i32_1 = arith.constant 0 : i32
    return %c0_i32, %c0_i32_0 : i32, i32
  }
  func.func @transform_3(%arg0: i32) -> (i32, i32) {
    %c0_i32 = arith.constant 0 : i32
    %c0_i32_0 = arith.constant 0 : i32
    %c0_i32_1 = arith.constant 0 : i32
    return %c0_i32, %c0_i32_0 : i32, i32
  }
  func.func @transform_4(%arg0: i32) -> (i32, i32) {
    %c0_i32 = arith.constant 0 : i32
    %c0_i32_0 = arith.constant 0 : i32
    %c0_i32_1 = arith.constant 0 : i32
    return %c0_i32, %c0_i32_0 : i32, i32
  }
  func.func @transform_5(%arg0: i32) -> (i32, i32) {
    %c0_i32 = arith.constant 0 : i32
    %c0_i32_0 = arith.constant 0 : i32
    %c0_i32_1 = arith.constant 0 : i32
    return %c0_i32, %c0_i32_0 : i32, i32
  }
  func.func @transform_6(%arg0: i32) -> (i32, i32, i32) {
    %c0_i32 = arith.constant 0 : i32
    %c0_i32_0 = arith.constant 0 : i32
    %c0_i32_1 = arith.constant 0 : i32
    return %arg0, %c0_i32, %c0_i32_0 : i32, i32, i32
  }
}

</mosaic_0001>

<llo_original>
// kernel: tpu_custom_call.1
$region0: #{tpu_custom_call.1}
  #allocation0 [shape = 'u32[]', space=smem, size = 0x4, offset = 0x4, fixed_abs, tag = 'smem constant byte address 0x4 - core index']
  #allocation1 [shape = 'u32[72,128]{1,0:T(1,128)}', space=vmem, size = 0x9000, scoped, tag = 'internal scratch']
  #allocation2 [shape = 'f32[4,332]{1,0:T(4,128)}', space=vmem, size = 0x1800, scoped, tag = 'scratch operand']
  #allocation3 [shape = 'f32[36,288]{1,0:T(8,128)}', space=vmem, size = 0xf000, scoped, tag = 'scratch operand']
  %s0 = inlined_call_operand.hbm [shape: f32[2,4,64], index: 0, kind: input, shape index: {}]
  %s1 = inlined_call_operand.hbm [shape: f32[2,8,256], index: 1, kind: input, shape index: {}]
  %s2 = inlined_call_operand.hbm [shape: f32[8,16], index: 2, kind: input, shape index: {}]
  %s3 = inlined_call_operand.vmem [shape: f32[4,8], index: 3, kind: input, shape index: {}]
  %s4 = inlined_call_operand.vmem [shape: f32[4,1], index: 4, kind: input, shape index: {}]
  %s5 = inlined_call_operand.hbm [shape: f32[16,36], index: 5, kind: input, shape index: {}]
  %s6 = inlined_call_operand.vmem [shape: f32[2,16,2], index: 6, kind: output, shape index: {}]
  %s7 = sld [smem:[#allocation0]]
  $region73: #{tpu_custom_call.1} parent=0
    _
  %s9 = ssub.s32 1, %s7
  %s10 = scalar_select 0, %s9, %s7
  $region1: #{tpu_custom_call.1} parent=0
    #allocation4 [shape = 'u8[4096]{0}', space=vmem, size = 0x1000, scoped, tag = 'input window, operand 0']
    #allocation5 [shape = 's32[2]{0}', space=sflag, size = 0x8, scoped, tag = 'scoped memory for tpu_custom_call.1']
    #allocation6 [shape = 'u8[16384]{0}', space=vmem, size = 0x4000, scoped, tag = 'input window, operand 1']
    #allocation7 [shape = 's32[2]{0}', space=sflag, size = 0x8, scoped, tag = 'scoped memory for tpu_custom_call.1']
    #allocation8 [shape = 'u8[4096]{0}', space=vmem, size = 0x1000, scoped, tag = 'input window, operand 2, single buffered']
    #allocation9 [shape = 'u8[8192]{0}', space=vmem, size = 0x2000, scoped, tag = 'input window, operand 5, single buffered']
    #allocation10 [shape = 's32[1]{0}', space=sflag, size = 0x4, scoped, tag = 'scoped memory for tpu_custom_call.1']
    %11 = vsyncpa [#allocation5], 0
    %s12 = scalar_lea.sflag [#allocation5], 1
    %13 = vsyncpa %s12, 0
    %14 = vsyncpa [#allocation7], 0
    %s15 = scalar_lea.sflag [#allocation7], 1
    %16 = vsyncpa %s15, 0
    %17 = vsyncpa [#allocation10], 0
    loop: start=0, step=1, limit=4
    $region2: #{tpu_custom_call.1} parent=1 // loop_pre_header
      _
    $region3: #{tpu_custom_call.1} parent=1 // loop_header
      %s19 = sphi 0, %s23
      %p20 = scmp.ge.s32.totalorder %s19, 4
      %s29 = sphi 0, %s31
      %s32 = sphi 0, %s29
      %s33 = sphi 0, %s32
      %s49 = sphi 0, %s33
      %s55 = sphi 0, %s57
      %s58 = sphi 0, %s55
      %s59 = sphi 0, %s58
      %s75 = sphi 0, %s59
      %s79 = sphi 0, %s79
      %s81 = sphi 0, %s79
      %s82 = sphi 0, %s81
      %s96 = sphi 0, %s82
      %s100 = sphi 0, %s100
      %s102 = sphi 0, %s100
      %s103 = sphi 0, %s102
      %s117 = sphi 0, %s103
      %s121 = sphi 0, %s121
      %s123 = sphi 0, %s121
      %s124 = sphi 0, %s123
      %s138 = sphi 0, %s124
      %s142 = sphi 0, %s142
      %s144 = sphi 0, %s142
      %s145 = sphi 0, %s144
      %s159 = sphi 0, %s145
      %s165 = sphi 0, %s167
      %s168 = sphi 0, %s165
      %s169 = sphi 0, %s168
      %s185 = sphi 0, %s169
    $region4: #{tpu_custom_call.1} parent=1 // loop_header_branch
      %22 = sbr.rel (%p20) target = $region8
    $region5: #{tpu_custom_call.1} parent=1 // loop_body
      %s24 = ssub.s32 %s19, 1
      %s25 = ssub.s32 %s19, 2
      %s26 = sadd.s32 %s19, 1
      %s27 = ssub.s32 %s19, %s26
      %p28 = scmp.eq.s32.totalorder %s27, 0
      %s30 = sadd.s32 %s29, 1
      %s31 = scalar_select %p28, %s29, %s30
      %p34 = pneg %p28
      %p35 = scmp.eq.s32.totalorder %s19, 1
      %p36 = por %p34, %p35
      %p37 = scmp.ne.s32.totalorder %s29, %s32
      %p38 = scmp.eq.s32.totalorder %s19, 0
      %p39 = por %p37, %p38
      %p40 = scmp.ne.s32.totalorder %s29, %s32
      %p41 = scmp.eq.s32.totalorder %s24, 1
      %p42 = por %p40, %p41
      %p43 = scmp.ne.s32.totalorder %s32, %s33
      %p44 = scmp.eq.s32.totalorder %s24, 0
      %p45 = por %p43, %p44
      %p46 = scmp.ne.s32.totalorder %s32, %s33
      %p47 = scmp.eq.s32.totalorder %s25, 1
      %p48 = por %p46, %p47
      %p50 = scmp.ne.s32.totalorder %s33, %s49
      %p51 = scmp.eq.s32.totalorder %s25, 0
      %p52 = por %p50, %p51
      %s53 = ssub.s32 %s19, %s26
      %p54 = scmp.eq.s32.totalorder %s53, 0
      %s56 = sadd.s32 %s55, 1
      %s57 = scalar_select %p54, %s55, %s56
      %p60 = pneg %p54
      %p61 = scmp.eq.s32.totalorder %s19, 1
      %p62 = por %p60, %p61
      %p63 = scmp.ne.s32.totalorder %s55, %s58
      %p64 = scmp.eq.s32.totalorder %s19, 0
      %p65 = por %p63, %p64
      %p66 = scmp.ne.s32.totalorder %s55, %s58
      %p67 = scmp.eq.s32.totalorder %s24, 1
      %p68 = por %p66, %p67
      %p69 = scmp.ne.s32.totalorder %s58, %s59
      %p70 = scmp.eq.s32.totalorder %s24, 0
      %p71 = por %p69, %p70
      %p72 = scmp.ne.s32.totalorder %s58, %s59
      %p73 = scmp.eq.s32.totalorder %s25, 1
      %p74 = por %p72, %p73
      %p76 = scmp.ne.s32.totalorder %s59, %s75
      %p77 = scmp.eq.s32.totalorder %s25, 0
      %p78 = por %p76, %p77
      %s80 = sadd.s32 %s79, 1
      %p83 = scmp.eq.s32.totalorder %s19, 1
      %p84 = scmp.ne.s32.totalorder %s79, %s81
      %p85 = scmp.eq.s32.totalorder %s19, 0
      %p86 = por %p84, %p85
      %p87 = scmp.ne.s32.totalorder %s79, %s81
      %p88 = scmp.eq.s32.totalorder %s24, 1
      %p89 = por %p87, %p88
      %p90 = scmp.ne.s32.totalorder %s81, %s82
      %p91 = scmp.eq.s32.totalorder %s24, 0
      %p92 = por %p90, %p91
      %p93 = scmp.ne.s32.totalorder %s81, %s82
      %p94 = scmp.eq.s32.totalorder %s25, 1
      %p95 = por %p93, %p94
      %p97 = scmp.ne.s32.totalorder %s82, %s96
      %p98 = scmp.eq.s32.totalorder %s25, 0
      %p99 = por %p97, %p98
      %s101 = sadd.s32 %s100, 1
      %p104 = scmp.eq.s32.totalorder %s19, 1
      %p105 = scmp.ne.s32.totalorder %s100, %s102
      %p106 = scmp.eq.s32.totalorder %s19, 0
      %p107 = por %p105, %p106
      %p108 = scmp.ne.s32.totalorder %s100, %s102
      %p109 = scmp.eq.s32.totalorder %s24, 1
      %p110 = por %p108, %p109
      %p111 = scmp.ne.s32.totalorder %s102, %s103
      %p112 = scmp.eq.s32.totalorder %s24, 0
      %p113 = por %p111, %p112
      %p114 = scmp.ne.s32.totalorder %s102, %s103
      %p115 = scmp.eq.s32.totalorder %s25, 1
      %p116 = por %p114, %p115
      %p118 = scmp.ne.s32.totalorder %s103, %s117
      %p119 = scmp.eq.s32.totalorder %s25, 0
      %p120 = por %p118, %p119
      %s122 = sadd.s32 %s121, 1
      %p125 = scmp.eq.s32.totalorder %s19, 1
      %p126 = scmp.ne.s32.totalorder %s121, %s123
      %p127 = scmp.eq.s32.totalorder %s19, 0
      %p128 = por %p126, %p127
      %p129 = scmp.ne.s32.totalorder %s121, %s123
      %p130 = scmp.eq.s32.totalorder %s24, 1
      %p131 = por %p129, %p130
      %p132 = scmp.ne.s32.totalorder %s123, %s124
      %p133 = scmp.eq.s32.totalorder %s24, 0
      %p134 = por %p132, %p133
      %p135 = scmp.ne.s32.totalorder %s123, %s124
      %p136 = scmp.eq.s32.totalorder %s25, 1
      %p137 = por %p135, %p136
      %p139 = scmp.ne.s32.totalorder %s124, %s138
      %p140 = scmp.eq.s32.totalorder %s25, 0
      %p141 = por %p139, %p140
      %s143 = sadd.s32 %s142, 1
      %p146 = scmp.eq.s32.totalorder %s19, 1
      %p147 = scmp.ne.s32.totalorder %s142, %s144
      %p148 = scmp.eq.s32.totalorder %s19, 0
      %p149 = por %p147, %p148
      %p150 = scmp.ne.s32.totalorder %s142, %s144
      %p151 = scmp.eq.s32.totalorder %s24, 1
      %p152 = por %p150, %p151
      %p153 = scmp.ne.s32.totalorder %s144, %s145
      %p154 = scmp.eq.s32.totalorder %s24, 0
      %p155 = por %p153, %p154
      %p156 = scmp.ne.s32.totalorder %s144, %s145
      %p157 = scmp.eq.s32.totalorder %s25, 1
      %p158 = por %p156, %p157
      %p160 = scmp.ne.s32.totalorder %s145, %s159
      %p161 = scmp.eq.s32.totalorder %s25, 0
      %p162 = por %p160, %p161
      %s163 = ssub.s32 %s19, %s26
      %p164 = scmp.eq.s32.totalorder %s163, 0
      %s166 = sadd.s32 %s165, 1
      %s167 = scalar_select %p164, %s165, %s166
      %p170 = pneg %p164
      %p171 = scmp.eq.s32.totalorder %s19, 1
      %p172 = por %p170, %p171
      %p173 = scmp.ne.s32.totalorder %s165, %s168
      %p174 = scmp.eq.s32.totalorder %s19, 0
      %p175 = por %p173, %p174
      %p176 = scmp.ne.s32.totalorder %s165, %s168
      %p177 = scmp.eq.s32.totalorder %s24, 1
      %p178 = por %p176, %p177
      %p179 = scmp.ne.s32.totalorder %s168, %s169
      %p180 = scmp.eq.s32.totalorder %s24, 0
      %p181 = por %p179, %p180
      %p182 = scmp.ne.s32.totalorder %s168, %s169
      %p183 = scmp.eq.s32.totalorder %s25, 1
      %p184 = por %p182, %p183
      %p186 = scmp.ne.s32.totalorder %s169, %s185
      %p187 = scmp.eq.s32.totalorder %s25, 0
      %p188 = por %p186, %p187
      %p189 = scmp.le.s32.totalorder 1, %s19
      %p190 = scmp.lt.s32.totalorder %s19, 3
      %p191 = pnand %p189, %p190
      %p192 = pneg %p191
      // Predicated region
      $region9: #{tpu_custom_call.1} parent=5 // pred_check
        _
      $region10: #{tpu_custom_call.1} parent=5 // pred_check_branch
        %194 = sbr.rel (%p191) target = $region12
      $region11: #{tpu_custom_call.1} parent=5 // pred_region
        %s195 = ssub.s32 %s19, 1
        // Predicated region
        $region13: #{tpu_custom_call.1} parent=11 // pred_check
          %p196 = pneg %p92
        $region14: #{tpu_custom_call.1} parent=11 // pred_check_branch
          %198 = sbr.rel (%p196) target = $region16
        $region15: #{tpu_custom_call.1} parent=11 // pred_region
          %200 = vsyncadd [#allocation7], 0
          %s202 = sshll.u32 %s2, 4
          %s203 = int_to_ptr.hbm [resolvable:$true] %s202
          %s204 = sshll.u32 [#allocation8], 4
          %s205 = int_to_ptr.vmem [resolvable:$true] %s204
          %207 = dma.hbm_to_vmem [thread:$0]  %s203, 128, %s205, [#allocation7]
        $region16: #{tpu_custom_call.1} parent=11 // pred_fallthru
          _
        // Predicated region
        $region17: #{tpu_custom_call.1} parent=11 // pred_check
          %p208 = pneg %p113
        $region18: #{tpu_custom_call.1} parent=11 // pred_check_branch
          %210 = sbr.rel (%p208) target = $region20
        $region19: #{tpu_custom_call.1} parent=11 // pred_region
          _
        $region20: #{tpu_custom_call.1} parent=11 // pred_fallthru
          _
        // Predicated region
        $region21: #{tpu_custom_call.1} parent=11 // pred_check
          %p211 = pneg %p134
        $region22: #{tpu_custom_call.1} parent=11 // pred_check_branch
          %213 = sbr.rel (%p211) target = $region24
        $region23: #{tpu_custom_call.1} parent=11 // pred_region
          _
        $region24: #{tpu_custom_call.1} parent=11 // pred_fallthru
          _
        // Predicated region
        $region25: #{tpu_custom_call.1} parent=11 // pred_check
          %p214 = pneg %p155
        $region26: #{tpu_custom_call.1} parent=11 // pred_check_branch
          %216 = sbr.rel (%p214) target = $region28
        $region27: #{tpu_custom_call.1} parent=11 // pred_region
          %218 = vsyncadd [#allocation10], 0
          %s219 = sshll.u32 %s5, 4
          %s220 = int_to_ptr.hbm [resolvable:$true] %s219
          %s221 = sshll.u32 [#allocation9], 4
          %s222 = int_to_ptr.vmem [resolvable:$true] %s221
          %227 = dma.hbm_to_vmem [thread:$0]  %s220, 256, %s222, [#allocation10], 128, 128, 8
        $region28: #{tpu_custom_call.1} parent=11 // pred_fallthru
          _
      $region12: #{tpu_custom_call.1} parent=5 // pred_fallthru
        _
      %p228 = scmp.lt.s32.totalorder %s19, 2
      // Predicated region
      $region29: #{tpu_custom_call.1} parent=5 // pred_check
        %p229 = pneg %p228
      $region30: #{tpu_custom_call.1} parent=5 // pred_check_branch
        %231 = sbr.rel (%p229) target = $region32
      $region31: #{tpu_custom_call.1} parent=5 // pred_region
        // Predicated region
        $region33: #{tpu_custom_call.1} parent=31 // pred_check
          %p232 = pneg %p39
        $region34: #{tpu_custom_call.1} parent=31 // pred_check_branch
          %234 = sbr.rel (%p232) target = $region36
        $region35: #{tpu_custom_call.1} parent=31 // pred_region
          %s235 = sand.u32 %s29, 1
          %s236 = scalar_lea.sflag [#allocation5], %s235
          %s237 = sand.u32 %s29, 1
          %s238 = smul.addr %s237, 4
          %s239 = scalar_lea.vmem [#allocation4], %s238
          %241 = vsyncadd %s236, 0
          %s242 = smul.addr %s19, 4
          %s243 = scalar_lea.hbm %s0, %s242
          %s245 = sshll.u32 %s243, 4
          %s246 = int_to_ptr.hbm [resolvable:$true] %s245
          %s247 = sshll.u32 %s239, 4
          %s248 = int_to_ptr.vmem [resolvable:$true] %s247
          %250 = dma.hbm_to_vmem [thread:$0]  %s246, 64, %s248, %s236
        $region36: #{tpu_custom_call.1} parent=31 // pred_fallthru
          _
        // Predicated region
        $region37: #{tpu_custom_call.1} parent=31 // pred_check
          %p251 = pneg %p65
        $region38: #{tpu_custom_call.1} parent=31 // pred_check_branch
          %253 = sbr.rel (%p251) target = $region40
        $region39: #{tpu_custom_call.1} parent=31 // pred_region
          %s254 = sand.u32 %s19, 1
          %s255 = scalar_lea.sflag [#allocation7], %s254
          %s256 = sand.u32 %s55, 1
          %s257 = smul.addr %s256, 16
          %s258 = scalar_lea.vmem [#allocation6], %s257
          %260 = vsyncadd %s255, 0
          %s261 = smul.addr %s19, 2
          %s262 = smul.addr %s261, 8
          %s263 = scalar_lea.hbm %s1, %s262
          %s265 = sshll.u32 %s263, 4
          %s266 = int_to_ptr.hbm [resolvable:$true] %s265
          %s267 = sshll.u32 %s258, 4
          %s268 = int_to_ptr.vmem [resolvable:$true] %s267
          %270 = dma.hbm_to_vmem [thread:$0]  %s266, 256, %s268, %s255
        $region40: #{tpu_custom_call.1} parent=31 // pred_fallthru
          _
      $region32: #{tpu_custom_call.1} parent=5 // pred_fallthru
        _
      %p271 = scmp.le.s32.totalorder 1, %s19
      %p272 = scmp.lt.s32.totalorder %s19, 3
      %p273 = pnand %p271, %p272
      %p274 = pneg %p273
      // Predicated region
      $region41: #{tpu_custom_call.1} parent=5 // pred_check
        _
      $region42: #{tpu_custom_call.1} parent=5 // pred_check_branch
        %276 = sbr.rel (%p273) target = $region44
      $region43: #{tpu_custom_call.1} parent=5 // pred_region
        %s277 = ssub.s32 %s19, 1
        %s278 = sand.u32 %s32, 1
        %s279 = scalar_lea.sflag [#allocation5], %s278
        %s280 = sand.u32 %s32, 1
        %s281 = smul.addr %s280, 4
        %s282 = scalar_lea.vmem [#allocation4], %s281
        // Predicated region
        $region45: #{tpu_custom_call.1} parent=43 // pred_check
          %p283 = pneg %p45
        $region46: #{tpu_custom_call.1} parent=43 // pred_check_branch
          %285 = sbr.rel (%p283) target = $region48
        $region47: #{tpu_custom_call.1} parent=43 // pred_region
          %287 = dma.done %s279, 64
        $region48: #{tpu_custom_call.1} parent=43 // pred_fallthru
          _
        %s288 = sand.u32 %s24, 1
        %s289 = scalar_lea.sflag [#allocation7], %s288
        %s290 = sand.u32 %s58, 1
        %s291 = smul.addr %s290, 16
        %s292 = scalar_lea.vmem [#allocation6], %s291
        // Predicated region
        $region49: #{tpu_custom_call.1} parent=43 // pred_check
          %p293 = pneg %p71
        $region50: #{tpu_custom_call.1} parent=43 // pred_check_branch
          %295 = sbr.rel (%p293) target = $region52
        $region51: #{tpu_custom_call.1} parent=43 // pred_region
          %297 = dma.done %s289, 256
        $region52: #{tpu_custom_call.1} parent=43 // pred_fallthru
          _
        // Predicated region
        $region53: #{tpu_custom_call.1} parent=43 // pred_check
          %p298 = pneg %p92
        $region54: #{tpu_custom_call.1} parent=43 // pred_check_branch
          %300 = sbr.rel (%p298) target = $region56
        $region55: #{tpu_custom_call.1} parent=43 // pred_region
          %302 = dma.done [#allocation7], 128
        $region56: #{tpu_custom_call.1} parent=43 // pred_fallthru
          _
        // Predicated region
        $region57: #{tpu_custom_call.1} parent=43 // pred_check
          %p303 = pneg %p155
        $region58: #{tpu_custom_call.1} parent=43 // pred_check_branch
          %305 = sbr.rel (%p303) target = $region60
        $region59: #{tpu_custom_call.1} parent=43 // pred_region
          %307 = dma.done [#allocation10], 256
        $region60: #{tpu_custom_call.1} parent=43 // pred_fallthru
          _
        %s308 = sand.u32 %s32, 1
        %s309 = scalar_lea.sflag [#allocation5], %s308
        %s310 = sand.u32 %s32, 1
        %s311 = smul.addr %s310, 4
        %s312 = scalar_lea.vmem [#allocation4], %s311
        %p313 = pneg %p45
        %p314 = pneg %p42
        %s315 = sand.u32 %s24, 1
        %s316 = scalar_lea.sflag [#allocation7], %s315
        %s317 = sand.u32 %s58, 1
        %s318 = smul.addr %s317, 16
        %s319 = scalar_lea.vmem [#allocation6], %s318
        %p320 = pneg %p71
        %p321 = pneg %p68
        %p322 = pneg %p92
        %p323 = pneg %p89
        %p324 = pneg %p113
        %p325 = pneg %p110
        %p326 = pneg %p134
        %p327 = pneg %p131
        %p328 = pneg %p155
        %p329 = pneg %p152
        %p330 = pneg %p181
        %p331 = pneg %p178
        %p332 = scmp.lt.s32.totalorder %s24, 1
        %s333 = scalar_select %p332, %s24, 1
        %s334 = smul.addr %s333, 2
        %s335 = smul.addr %s334, 8
        %s336 = scalar_lea.vmem %s6, %s335
        %p337 = scmp.lt.s32.totalorder %s24, 1
        %s338 = scalar_select %p337, %s24, 1
        %s339 = smul.addr %s338, 2
        %s340 = smul.addr %s339, 8
        %s341 = scalar_lea.vmem %s6, %s340
        %342 = vst [vmem:[#allocation2] sm:$0xff] 0.0
        %vm343 = vcmask 617472
        %344 = vst.msk [vmem:[#allocation2 + $0x8] sm:$0xf] %vm343, 0.0
        %v345 = vld [vmem:[%s3] sm:$0xf]
        %v346 = vld [vmem:[%s292] sm:$0xff]
        %v347 = vld [vmem:[%s292 + $0x8] sm:$0xff]
        %v348 = vld [vmem:[%s4] sm:$0xf]
        %350 = vset.pattern.permute.xlu0 0
        %351 = vperm.xlu0 %350, %v348
        %v352 = vpop.permute.xlu0 %351
        %vm354 = vcmask 64512
        %v356 = vsel %vm354, %v345, 0
        %358 = vmatpush.msra.mxu0 0.0
        %359 = vmatpush.msra.mxu0 0.0
        %360 = vmatpush.msra.mxu0 0.0
        %361 = vmatpush.msra.mxu0 0.0
        %362 = vmatpush.msra.mxu0 0.0
        %363 = vmatpush.msra.mxu0 0.0
        %364 = vmatpush.msra.mxu0 0.0
        %365 = vmatpush.msra.mxu0 0.0
        %366 = vmatpush.msra.mxu0 0.0
        %367 = vmatpush.msra.mxu0 0.0
        %368 = vmatpush.msra.mxu0 0.0
        %369 = vmatpush.msra.mxu0 0.0
        %370 = vmatpush.msra.mxu0 0.0
        %371 = vmatpush.msra.mxu0 0.0
        %372 = vmatpush.msra.mxu0 0.0
        %373 = vmatpush.msra.mxu0 %v346
        %374 = vmatmul.f32.gmra.mxu0 %v356
        %v375 = vpop.f32.mrf.mxu0
        %v376 = vadd.f32 %v352, %v375
        %377 = vdwg.mxu0
        %378 = vmatpush.msra.mxu0 0.0
        %379 = vmatpush.msra.mxu0 0.0
        %380 = vmatpush.msra.mxu0 0.0
        %381 = vmatpush.msra.mxu0 0.0
        %382 = vmatpush.msra.mxu0 0.0
        %383 = vmatpush.msra.mxu0 0.0
        %384 = vmatpush.msra.mxu0 0.0
        %385 = vmatpush.msra.mxu0 0.0
        %386 = vmatpush.msra.mxu0 0.0
        %387 = vmatpush.msra.mxu0 0.0
        %388 = vmatpush.msra.mxu0 0.0
        %389 = vmatpush.msra.mxu0 0.0
        %390 = vmatpush.msra.mxu0 0.0
        %391 = vmatpush.msra.mxu0 0.0
        %392 = vmatpush.msra.mxu0 0.0
        %393 = vmatpush.msra.mxu0 %v347
        %394 = vmatmul.f32.gmra.mxu0 %v356
        %v395 = vpop.f32.mrf.mxu0
        %v396 = vadd.f32 %v352, %v395
        %397 = vdwg.mxu0
        %v398 = vld [vmem:[#allocation8] sm:$0xff]
        %v399 = vld [vmem:[%s282] sm:$0xf]
        %v401 = vsel %vm354, %v399, 0
        %403 = vmatpush.msra.mxu0 0.0
        %404 = vmatpush.msra.mxu0 0.0
        %405 = vmatpush.msra.mxu0 0.0
        %406 = vmatpush.msra.mxu0 0.0
        %407 = vmatpush.msra.mxu0 0.0
        %408 = vmatpush.msra.mxu0 0.0
        %409 = vmatpush.msra.mxu0 0.0
        %410 = vmatpush.msra.mxu0 0.0
        %411 = vmatpush.msra.mxu0 0.0
        %412 = vmatpush.msra.mxu0 0.0
        %413 = vmatpush.msra.mxu0 0.0
        %414 = vmatpush.msra.mxu0 0.0
        %415 = vmatpush.msra.mxu0 0.0
        %416 = vmatpush.msra.mxu0 0.0
        %417 = vmatpush.msra.mxu0 0.0
        %418 = vmatpush.msra.mxu0 %v398
        %419 = vmatmul.f32.gmra.mxu0 %v401
        %v420 = vpop.f32.mrf.mxu0
        %v421 = vadd.f32 %v376, %v420
        %422 = vdwg.mxu0
        %424 = vrot.lane.b32.xlu0 %v421, 19
        %v425 = vpop.permute.xlu0 %424
        %vm427 = vcmask 281752
        %428 = vst.msk [vmem:[#allocation2] sm:$0xf] %vm427, %v425
        %v429 = vld [vmem:[%s282] sm:$0xf]
        %v430 = vmul.f32 %v429, 0.53333336
        %v431 = vmul.f32 %v429, 0.46666667
        %433 = vrot.lane.b32.xlu0 %v431, 120
        %v434 = vpop.permute.xlu0 %433
        %v436 = vadd.f32 %v430, %v434
        %438 = vrot.lane.b32.xlu0 %v376, 112
        %v439 = vpop.permute.xlu0 %438
        %v442 = vsel %vm354, %v436, 0
        %444 = vmatpush.msra.mxu0 0.0
        %445 = vmatpush.msra.mxu0 0.0
        %446 = vmatpush.msra.mxu0 0.0
        %447 = vmatpush.msra.mxu0 0.0
        %448 = vmatpush.msra.mxu0 0.0
        %449 = vmatpush.msra.mxu0 0.0
        %450 = vmatpush.msra.mxu0 0.0
        %451 = vmatpush.msra.mxu0 0.0
        %452 = vmatpush.msra.mxu0 0.0
        %453 = vmatpush.msra.mxu0 0.0
        %454 = vmatpush.msra.mxu0 0.0
        %455 = vmatpush.msra.mxu0 0.0
        %456 = vmatpush.msra.mxu0 0.0
        %457 = vmatpush.msra.mxu0 0.0
        %458 = vmatpush.msra.mxu0 0.0
        %459 = vmatpush.msra.mxu0 %v398
        %460 = vmatmul.f32.gmra.mxu0 %v442
        %v461 = vpop.f32.mrf.mxu0
        %v462 = vadd.f32 %v439, %v461
        %463 = vdwg.mxu0
        %465 = vrot.lane.b32.xlu0 %v462, 37
        %v466 = vpop.permute.xlu0 %465
        %vm468 = vcmask 429352
        %469 = vst.msk [vmem:[#allocation2] sm:$0xf] %vm468, %v466
        %v470 = vld [vmem:[%s282] sm:$0xf]
        %v471 = vmul.f32 %v470, 0.06666667
        %v472 = vmul.f32 %v470, 0.93333334
        %474 = vrot.lane.b32.xlu0 %v472, 120
        %v475 = vpop.permute.xlu0 %474
        %v477 = vadd.f32 %v471, %v475
        %478 = vrot.lane.b32.xlu0 %v376, 96
        %v479 = vpop.permute.xlu0 %478
        %v482 = vsel %vm354, %v477, 0
        %484 = vmatpush.msra.mxu0 0.0
        %485 = vmatpush.msra.mxu0 0.0
        %486 = vmatpush.msra.mxu0 0.0
        %487 = vmatpush.msra.mxu0 0.0
        %488 = vmatpush.msra.mxu0 0.0
        %489 = vmatpush.msra.mxu0 0.0
        %490 = vmatpush.msra.mxu0 0.0
        %491 = vmatpush.msra.mxu0 0.0
        %492 = vmatpush.msra.mxu0 0.0
        %493 = vmatpush.msra.mxu0 0.0
        %494 = vmatpush.msra.mxu0 0.0
        %495 = vmatpush.msra.mxu0 0.0
        %496 = vmatpush.msra.mxu0 0.0
        %497 = vmatpush.msra.mxu0 0.0
        %498 = vmatpush.msra.mxu0 0.0
        %499 = vmatpush.msra.mxu0 %v398
        %500 = vmatmul.f32.gmra.mxu0 %v482
        %v501 = vpop.f32.mrf.mxu0
        %v502 = vadd.f32 %v479, %v501
        %503 = vdwg.mxu0
        %505 = vrot.lane.b32.xlu0 %v502, 55
        %v506 = vpop.permute.xlu0 %505
        %vm508 = vcmask 576952
        %509 = vst.msk [vmem:[#allocation2] sm:$0xf] %vm508, %v506
        %v510 = vld [vmem:[%s282] sm:$0xf]
        %v511 = vmul.f32 %v510, 0.6
        %v512 = vmul.f32 %v510, 0.4
        %514 = vrot.lane.b32.xlu0 %v512, 120
        %v515 = vpop.permute.xlu0 %514
        %v517 = vadd.f32 %v511, %v515
        %519 = vrot.lane.b32.xlu0 %v517, 120
        %v520 = vpop.permute.xlu0 %519
        %521 = vrot.lane.b32.xlu0 %v376, 80
        %v522 = vpop.permute.xlu0 %521
        %v524 = vsel %vm354, %v520, 0
        %526 = vmatpush.msra.mxu0 0.0
        %527 = vmatpush.msra.mxu0 0.0
        %528 = vmatpush.msra.mxu0 0.0
        %529 = vmatpush.msra.mxu0 0.0
        %530 = vmatpush.msra.mxu0 0.0
        %531 = vmatpush.msra.mxu0 0.0
        %532 = vmatpush.msra.mxu0 0.0
        %533 = vmatpush.msra.mxu0 0.0
        %534 = vmatpush.msra.mxu0 0.0
        %535 = vmatpush.msra.mxu0 0.0
        %536 = vmatpush.msra.mxu0 0.0
        %537 = vmatpush.msra.mxu0 0.0
        %538 = vmatpush.msra.mxu0 0.0
        %539 = vmatpush.msra.mxu0 0.0
        %540 = vmatpush.msra.mxu0 0.0
        %541 = vmatpush.msra.mxu0 %v398
        %542 = vmatmul.f32.gmra.mxu0 %v524
        %v543 = vpop.f32.mrf.mxu0
        %v544 = vadd.f32 %v522, %v543
        %545 = vdwg.mxu0
        %547 = vrot.lane.b32.xlu0 %v544, 73
        %v548 = vpop.permute.xlu0 %547
        %vm550 = vcmask 724552
        %551 = vst.msk [vmem:[#allocation2] sm:$0xf] %vm550, %v548
        %v552 = vld [vmem:[%s282] sm:$0xf]
        %v553 = vmul.f32 %v552, 0.13333334
        %v554 = vmul.f32 %v552, 0.8666667
        %556 = vrot.lane.b32.xlu0 %v554, 120
        %v557 = vpop.permute.xlu0 %556
        %v559 = vadd.f32 %v553, %v557
        %561 = vrot.lane.b32.xlu0 %v559, 120
        %v562 = vpop.permute.xlu0 %561
        %563 = vrot.lane.b32.xlu0 %v376, 64
        %v564 = vpop.permute.xlu0 %563
        %v566 = vsel %vm354, %v562, 0
        %568 = vmatpush.msra.mxu0 0.0
        %569 = vmatpush.msra.mxu0 0.0
        %570 = vmatpush.msra.mxu0 0.0
        %571 = vmatpush.msra.mxu0 0.0
        %572 = vmatpush.msra.mxu0 0.0
        %573 = vmatpush.msra.mxu0 0.0
        %574 = vmatpush.msra.mxu0 0.0
        %575 = vmatpush.msra.mxu0 0.0
        %576 = vmatpush.msra.mxu0 0.0
        %577 = vmatpush.msra.mxu0 0.0
        %578 = vmatpush.msra.mxu0 0.0
        %579 = vmatpush.msra.mxu0 0.0
        %580 = vmatpush.msra.mxu0 0.0
        %581 = vmatpush.msra.mxu0 0.0
        %582 = vmatpush.msra.mxu0 0.0
        %583 = vmatpush.msra.mxu0 %v398
        %584 = vmatmul.f32.gmra.mxu0 %v566
        %v585 = vpop.f32.mrf.mxu0
        %v586 = vadd.f32 %v564, %v585
        %587 = vdwg.mxu0
        %589 = vrot.lane.b32.xlu0 %v586, 91
        %v590 = vpop.permute.xlu0 %589
        %vm592 = vcmask 872152
        %593 = vst.msk [vmem:[#allocation2] sm:$0xf] %vm592, %v590
        %v594 = vld [vmem:[%s282] sm:$0xf]
        %v595 = vmul.f32 %v594, 0.6666667
        %v596 = vmul.f32 %v594, 0.33333334
        %598 = vrot.lane.b32.xlu0 %v596, 120
        %v599 = vpop.permute.xlu0 %598
        %v601 = vadd.f32 %v595, %v599
        %603 = vrot.lane.b32.xlu0 %v601, 112
        %v604 = vpop.permute.xlu0 %603
        %605 = vrot.lane.b32.xlu0 %v376, 48
        %v606 = vpop.permute.xlu0 %605
        %v608 = vsel %vm354, %v604, 0
        %610 = vmatpush.msra.mxu0 0.0
        %611 = vmatpush.msra.mxu0 0.0
        %612 = vmatpush.msra.mxu0 0.0
        %613 = vmatpush.msra.mxu0 0.0
        %614 = vmatpush.msra.mxu0 0.0
        %615 = vmatpush.msra.mxu0 0.0
        %616 = vmatpush.msra.mxu0 0.0
        %617 = vmatpush.msra.mxu0 0.0
        %618 = vmatpush.msra.mxu0 0.0
        %619 = vmatpush.msra.mxu0 0.0
        %620 = vmatpush.msra.mxu0 0.0
        %621 = vmatpush.msra.mxu0 0.0
        %622 = vmatpush.msra.mxu0 0.0
        %623 = vmatpush.msra.mxu0 0.0
        %624 = vmatpush.msra.mxu0 0.0
        %625 = vmatpush.msra.mxu0 %v398
        %626 = vmatmul.f32.gmra.mxu0 %v608
        %v627 = vpop.f32.mrf.mxu0
        %v628 = vadd.f32 %v606, %v627
        %629 = vdwg.mxu0
        %631 = vrot.lane.b32.xlu0 %v628, 109
        %v632 = vpop.permute.xlu0 %631
        %vm634 = vcmask 1019752
        %635 = vst.msk [vmem:[#allocation2] sm:$0xf] %vm634, %v632
        %v636 = vld [vmem:[%s282] sm:$0xf]
        %v637 = vmul.f32 %v636, 0.2
        %v638 = vmul.f32 %v636, 0.8
        %640 = vrot.lane.b32.xlu0 %v638, 120
        %v641 = vpop.permute.xlu0 %640
        %v643 = vadd.f32 %v637, %v641
        %645 = vrot.lane.b32.xlu0 %v643, 112
        %v646 = vpop.permute.xlu0 %645
        %647 = vrot.lane.b32.xlu0 %v376, 32
        %v648 = vpop.permute.xlu0 %647
        %v650 = vsel %vm354, %v646, 0
        %652 = vmatpush.msra.mxu0 0.0
        %653 = vmatpush.msra.mxu0 0.0
        %654 = vmatpush.msra.mxu0 0.0
        %655 = vmatpush.msra.mxu0 0.0
        %656 = vmatpush.msra.mxu0 0.0
        %657 = vmatpush.msra.mxu0 0.0
        %658 = vmatpush.msra.mxu0 0.0
        %659 = vmatpush.msra.mxu0 0.0
        %660 = vmatpush.msra.mxu0 0.0
        %661 = vmatpush.msra.mxu0 0.0
        %662 = vmatpush.msra.mxu0 0.0
        %663 = vmatpush.msra.mxu0 0.0
        %664 = vmatpush.msra.mxu0 0.0
        %665 = vmatpush.msra.mxu0 0.0
        %666 = vmatpush.msra.mxu0 0.0
        %667 = vmatpush.msra.mxu0 %v398
        %668 = vmatmul.f32.gmra.mxu0 %v650
        %v669 = vpop.f32.mrf.mxu0
        %v670 = vadd.f32 %v648, %v669
        %671 = vdwg.mxu0
        %673 = vrot.lane.b32.xlu0 %v670, 127
        %v674 = vpop.permute.xlu0 %673
        %v675 = vrot.slane %v674, 4
        %vm676 = vcmask 1039360
        %v677 = vsel %vm676, %v675, %v674
        %vm679 = vcmask 1044472
        %vm680 = vcmask 121860
        %vm681 = vmor %vm680, %vm679
        %682 = vst.msk [vmem:[#allocation2] sm:$0xff] %vm681, %v677
        %v683 = vld [vmem:[%s282] sm:$0xf]
        %v684 = vmul.f32 %v683, 0.73333335
        %v685 = vmul.f32 %v683, 0.26666668
        %687 = vrot.lane.b32.xlu0 %v685, 120
        %v688 = vpop.permute.xlu0 %687
        %v690 = vadd.f32 %v684, %v688
        %692 = vrot.lane.b32.xlu0 %v690, 104
        %v693 = vpop.permute.xlu0 %692
        %694 = vrot.lane.b32.xlu0 %v376, 16
        %v695 = vpop.permute.xlu0 %694
        %v697 = vsel %vm354, %v693, 0
        %699 = vmatpush.msra.mxu0 0.0
        %700 = vmatpush.msra.mxu0 0.0
        %701 = vmatpush.msra.mxu0 0.0
        %702 = vmatpush.msra.mxu0 0.0
        %703 = vmatpush.msra.mxu0 0.0
        %704 = vmatpush.msra.mxu0 0.0
        %705 = vmatpush.msra.mxu0 0.0
        %706 = vmatpush.msra.mxu0 0.0
        %707 = vmatpush.msra.mxu0 0.0
        %708 = vmatpush.msra.mxu0 0.0
        %709 = vmatpush.msra.mxu0 0.0
        %710 = vmatpush.msra.mxu0 0.0
        %711 = vmatpush.msra.mxu0 0.0
        %712 = vmatpush.msra.mxu0 0.0
        %713 = vmatpush.msra.mxu0 0.0
        %714 = vmatpush.msra.mxu0 %v398
        %715 = vmatmul.f32.gmra.mxu0 %v697
        %v716 = vpop.f32.mrf.mxu0
        %v717 = vadd.f32 %v695, %v716
        %718 = vdwg.mxu0
        %720 = vrot.lane.b32.xlu0 %v717, 17
        %v721 = vpop.permute.xlu0 %720
        %vm723 = vcmask 265352
        %724 = vst.msk [vmem:[#allocation2 + $0x4] sm:$0xf] %vm723, %v721
        %v725 = vld [vmem:[%s282] sm:$0xf]
        %v726 = vmul.f32 %v725, 0.26666668
        %v727 = vmul.f32 %v725, 0.73333335
        %729 = vrot.lane.b32.xlu0 %v727, 120
        %v730 = vpop.permute.xlu0 %729
        %v732 = vadd.f32 %v726, %v730
        %734 = vrot.lane.b32.xlu0 %v732, 104
        %v735 = vpop.permute.xlu0 %734
        %v736 = vsel %vm354, %v735, 0
        %738 = vmatpush.msra.mxu0 0.0
        %739 = vmatpush.msra.mxu0 0.0
        %740 = vmatpush.msra.mxu0 0.0
        %741 = vmatpush.msra.mxu0 0.0
        %742 = vmatpush.msra.mxu0 0.0
        %743 = vmatpush.msra.mxu0 0.0
        %744 = vmatpush.msra.mxu0 0.0
        %745 = vmatpush.msra.mxu0 0.0
        %746 = vmatpush.msra.mxu0 0.0
        %747 = vmatpush.msra.mxu0 0.0
        %748 = vmatpush.msra.mxu0 0.0
        %749 = vmatpush.msra.mxu0 0.0
        %750 = vmatpush.msra.mxu0 0.0
        %751 = vmatpush.msra.mxu0 0.0
        %752 = vmatpush.msra.mxu0 0.0
        %753 = vmatpush.msra.mxu0 %v398
        %754 = vmatmul.f32.gmra.mxu0 %v736
        %v755 = vpop.f32.mrf.mxu0
        %v756 = vadd.f32 %v396, %v755
        %757 = vdwg.mxu0
        %759 = vrot.lane.b32.xlu0 %v756, 35
        %v760 = vpop.permute.xlu0 %759
        %vm762 = vcmask 412952
        %763 = vst.msk [vmem:[#allocation2 + $0x4] sm:$0xf] %vm762, %v760
        %v764 = vld [vmem:[%s282] sm:$0xf]
        %v765 = vmul.f32 %v764, 0.8
        %v766 = vmul.f32 %v764, 0.2
        %768 = vrot.lane.b32.xlu0 %v766, 120
        %v769 = vpop.permute.xlu0 %768
        %v771 = vadd.f32 %v765, %v769
        %773 = vrot.lane.b32.xlu0 %v771, 96
        %v774 = vpop.permute.xlu0 %773
        %776 = vrot.lane.b32.xlu0 %v396, 112
        %v777 = vpop.permute.xlu0 %776
        %v779 = vsel %vm354, %v774, 0
        %781 = vmatpush.msra.mxu0 0.0
        %782 = vmatpush.msra.mxu0 0.0
        %783 = vmatpush.msra.mxu0 0.0
        %784 = vmatpush.msra.mxu0 0.0
        %785 = vmatpush.msra.mxu0 0.0
        %786 = vmatpush.msra.mxu0 0.0
        %787 = vmatpush.msra.mxu0 0.0
        %788 = vmatpush.msra.mxu0 0.0
        %789 = vmatpush.msra.mxu0 0.0
        %790 = vmatpush.msra.mxu0 0.0
        %791 = vmatpush.msra.mxu0 0.0
        %792 = vmatpush.msra.mxu0 0.0
        %793 = vmatpush.msra.mxu0 0.0
        %794 = vmatpush.msra.mxu0 0.0
        %795 = vmatpush.msra.mxu0 0.0
        %796 = vmatpush.msra.mxu0 %v398
        %797 = vmatmul.f32.gmra.mxu0 %v779
        %v798 = vpop.f32.mrf.mxu0
        %v799 = vadd.f32 %v777, %v798
        %800 = vdwg.mxu0
        %802 = vrot.lane.b32.xlu0 %v799, 53
        %v803 = vpop.permute.xlu0 %802
        %vm805 = vcmask 560552
        %806 = vst.msk [vmem:[#allocation2 + $0x4] sm:$0xf] %vm805, %v803
        %v807 = vld [vmem:[%s282] sm:$0xf]
        %v808 = vmul.f32 %v807, 0.33333334
        %v809 = vmul.f32 %v807, 0.6666667
        %811 = vrot.lane.b32.xlu0 %v809, 120
        %v812 = vpop.permute.xlu0 %811
        %v814 = vadd.f32 %v808, %v812
        %816 = vrot.lane.b32.xlu0 %v814, 96
        %v817 = vpop.permute.xlu0 %816
        %818 = vrot.lane.b32.xlu0 %v396, 96
        %v819 = vpop.permute.xlu0 %818
        %v821 = vsel %vm354, %v817, 0
        %823 = vmatpush.msra.mxu0 0.0
        %824 = vmatpush.msra.mxu0 0.0
        %825 = vmatpush.msra.mxu0 0.0
        %826 = vmatpush.msra.mxu0 0.0
        %827 = vmatpush.msra.mxu0 0.0
        %828 = vmatpush.msra.mxu0 0.0
        %829 = vmatpush.msra.mxu0 0.0
        %830 = vmatpush.msra.mxu0 0.0
        %831 = vmatpush.msra.mxu0 0.0
        %832 = vmatpush.msra.mxu0 0.0
        %833 = vmatpush.msra.mxu0 0.0
        %834 = vmatpush.msra.mxu0 0.0
        %835 = vmatpush.msra.mxu0 0.0
        %836 = vmatpush.msra.mxu0 0.0
        %837 = vmatpush.msra.mxu0 0.0
        %838 = vmatpush.msra.mxu0 %v398
        %839 = vmatmul.f32.gmra.mxu0 %v821
        %v840 = vpop.f32.mrf.mxu0
        %v841 = vadd.f32 %v819, %v840
        %842 = vdwg.mxu0
        %844 = vrot.lane.b32.xlu0 %v841, 71
        %v845 = vpop.permute.xlu0 %844
        %vm847 = vcmask 708152
        %848 = vst.msk [vmem:[#allocation2 + $0x4] sm:$0xf] %vm847, %v845
        %v849 = vld [vmem:[%s282] sm:$0xf]
        %v850 = vmul.f32 %v849, 0.8666667
        %v851 = vmul.f32 %v849, 0.13333334
        %853 = vrot.lane.b32.xlu0 %v851, 120
        %v854 = vpop.permute.xlu0 %853
        %v856 = vadd.f32 %v850, %v854
        %858 = vrot.lane.b32.xlu0 %v856, 88
        %v859 = vpop.permute.xlu0 %858
        %860 = vrot.lane.b32.xlu0 %v396, 80
        %v861 = vpop.permute.xlu0 %860
        %v863 = vsel %vm354, %v859, 0
        %865 = vmatpush.msra.mxu0 0.0
        %866 = vmatpush.msra.mxu0 0.0
        %867 = vmatpush.msra.mxu0 0.0
        %868 = vmatpush.msra.mxu0 0.0
        %869 = vmatpush.msra.mxu0 0.0
        %870 = vmatpush.msra.mxu0 0.0
        %871 = vmatpush.msra.mxu0 0.0
        %872 = vmatpush.msra.mxu0 0.0
        %873 = vmatpush.msra.mxu0 0.0
        %874 = vmatpush.msra.mxu0 0.0
        %875 = vmatpush.msra.mxu0 0.0
        %876 = vmatpush.msra.mxu0 0.0
        %877 = vmatpush.msra.mxu0 0.0
        %878 = vmatpush.msra.mxu0 0.0
        %879 = vmatpush.msra.mxu0 0.0
        %880 = vmatpush.msra.mxu0 %v398
        %881 = vmatmul.f32.gmra.mxu0 %v863
        %v882 = vpop.f32.mrf.mxu0
        %v883 = vadd.f32 %v861, %v882
        %884 = vdwg.mxu0
        %886 = vrot.lane.b32.xlu0 %v883, 89
        %v887 = vpop.permute.xlu0 %886
        %vm889 = vcmask 855752
        %890 = vst.msk [vmem:[#allocation2 + $0x4] sm:$0xf] %vm889, %v887
        %v891 = vld [vmem:[%s282] sm:$0xf]
        %v892 = vmul.f32 %v891, 0.4
        %v893 = vmul.f32 %v891, 0.6
        %895 = vrot.lane.b32.xlu0 %v893, 120
        %v896 = vpop.permute.xlu0 %895
        %v898 = vadd.f32 %v892, %v896
        %900 = vrot.lane.b32.xlu0 %v898, 88
        %v901 = vpop.permute.xlu0 %900
        %902 = vrot.lane.b32.xlu0 %v396, 64
        %v903 = vpop.permute.xlu0 %902
        %v905 = vsel %vm354, %v901, 0
        %907 = vmatpush.msra.mxu0 0.0
        %908 = vmatpush.msra.mxu0 0.0
        %909 = vmatpush.msra.mxu0 0.0
        %910 = vmatpush.msra.mxu0 0.0
        %911 = vmatpush.msra.mxu0 0.0
        %912 = vmatpush.msra.mxu0 0.0
        %913 = vmatpush.msra.mxu0 0.0
        %914 = vmatpush.msra.mxu0 0.0
        %915 = vmatpush.msra.mxu0 0.0
        %916 = vmatpush.msra.mxu0 0.0
        %917 = vmatpush.msra.mxu0 0.0
        %918 = vmatpush.msra.mxu0 0.0
        %919 = vmatpush.msra.mxu0 0.0
        %920 = vmatpush.msra.mxu0 0.0
        %921 = vmatpush.msra.mxu0 0.0
        %922 = vmatpush.msra.mxu0 %v398
        %923 = vmatmul.f32.gmra.mxu0 %v905
        %v924 = vpop.f32.mrf.mxu0
        %v925 = vadd.f32 %v903, %v924
        %926 = vdwg.mxu0
        %928 = vrot.lane.b32.xlu0 %v925, 107
        %v929 = vpop.permute.xlu0 %928
        %vm931 = vcmask 1003352
        %932 = vst.msk [vmem:[#allocation2 + $0x4] sm:$0xf] %vm931, %v929
        %v933 = vld [vmem:[%s282] sm:$0xf]
        %v934 = vmul.f32 %v933, 0.93333334
        %v935 = vmul.f32 %v933, 0.06666667
        %937 = vrot.lane.b32.xlu0 %v935, 120
        %v938 = vpop.permute.xlu0 %937
        %v940 = vadd.f32 %v934, %v938
        %942 = vrot.lane.b32.xlu0 %v940, 80
        %v943 = vpop.permute.xlu0 %942
        %944 = vrot.lane.b32.xlu0 %v396, 48
        %v945 = vpop.permute.xlu0 %944
        %v947 = vsel %vm354, %v943, 0
        %949 = vmatpush.msra.mxu0 0.0
        %950 = vmatpush.msra.mxu0 0.0
        %951 = vmatpush.msra.mxu0 0.0
        %952 = vmatpush.msra.mxu0 0.0
        %953 = vmatpush.msra.mxu0 0.0
        %954 = vmatpush.msra.mxu0 0.0
        %955 = vmatpush.msra.mxu0 0.0
        %956 = vmatpush.msra.mxu0 0.0
        %957 = vmatpush.msra.mxu0 0.0
        %958 = vmatpush.msra.mxu0 0.0
        %959 = vmatpush.msra.mxu0 0.0
        %960 = vmatpush.msra.mxu0 0.0
        %961 = vmatpush.msra.mxu0 0.0
        %962 = vmatpush.msra.mxu0 0.0
        %963 = vmatpush.msra.mxu0 0.0
        %964 = vmatpush.msra.mxu0 %v398
        %965 = vmatmul.f32.gmra.mxu0 %v947
        %v966 = vpop.f32.mrf.mxu0
        %v967 = vadd.f32 %v945, %v966
        %968 = vdwg.mxu0
        %970 = vrot.lane.b32.xlu0 %v967, 125
        %v971 = vpop.permute.xlu0 %970
        %v972 = vrot.slane %v971, 4
        %vm973 = vcmask 1022976
        %v974 = vsel %vm973, %v972, %v971
        %vm976 = vcmask 1044456
        %vm977 = vcmask 105476
        %vm978 = vmor %vm977, %vm976
        %979 = vst.msk [vmem:[#allocation2 + $0x4] sm:$0xff] %vm978, %v974
        %v980 = vld [vmem:[%s282] sm:$0xf]
        %v981 = vmul.f32 %v980, 0.46666667
        %v982 = vmul.f32 %v980, 0.53333336
        %984 = vrot.lane.b32.xlu0 %v982, 120
        %v985 = vpop.permute.xlu0 %984
        %v987 = vadd.f32 %v981, %v985
        %989 = vrot.lane.b32.xlu0 %v987, 80
        %v990 = vpop.permute.xlu0 %989
        %991 = vrot.lane.b32.xlu0 %v396, 32
        %v992 = vpop.permute.xlu0 %991
        %v994 = vsel %vm354, %v990, 0
        %996 = vmatpush.msra.mxu0 0.0
        %997 = vmatpush.msra.mxu0 0.0
        %998 = vmatpush.msra.mxu0 0.0
        %999 = vmatpush.msra.mxu0 0.0
        %1000 = vmatpush.msra.mxu0 0.0
        %1001 = vmatpush.msra.mxu0 0.0
        %1002 = vmatpush.msra.mxu0 0.0
        %1003 = vmatpush.msra.mxu0 0.0
        %1004 = vmatpush.msra.mxu0 0.0
        %1005 = vmatpush.msra.mxu0 0.0
        %1006 = vmatpush.msra.mxu0 0.0
        %1007 = vmatpush.msra.mxu0 0.0
        %1008 = vmatpush.msra.mxu0 0.0
        %1009 = vmatpush.msra.mxu0 0.0
        %1010 = vmatpush.msra.mxu0 0.0
        %1011 = vmatpush.msra.mxu0 %v398
        %1012 = vmatmul.f32.gmra.mxu0 %v994
        %v1013 = vpop.f32.mrf.mxu0
        %v1014 = vadd.f32 %v992, %v1013
        %1015 = vdwg.mxu0
        %1017 = vrot.lane.b32.xlu0 %v1014, 15
        %v1018 = vpop.permute.xlu0 %1017
        %vm1020 = vcmask 248952
        %1021 = vst.msk [vmem:[#allocation2 + $0x8] sm:$0xf] %vm1020, %v1018
        %v1022 = vld [vmem:[%s282] sm:$0xf]
        %1024 = vrot.lane.b32.xlu0 %v1022, 72
        %v1025 = vpop.permute.xlu0 %1024
        %1026 = vrot.lane.b32.xlu0 %v396, 16
        %v1027 = vpop.permute.xlu0 %1026
        %v1029 = vsel %vm354, %v1025, 0
        %1031 = vmatpush.msra.mxu0 0.0
        %1032 = vmatpush.msra.mxu0 0.0
        %1033 = vmatpush.msra.mxu0 0.0
        %1034 = vmatpush.msra.mxu0 0.0
        %1035 = vmatpush.msra.mxu0 0.0
        %1036 = vmatpush.msra.mxu0 0.0
        %1037 = vmatpush.msra.mxu0 0.0
        %1038 = vmatpush.msra.mxu0 0.0
        %1039 = vmatpush.msra.mxu0 0.0
        %1040 = vmatpush.msra.mxu0 0.0
        %1041 = vmatpush.msra.mxu0 0.0
        %1042 = vmatpush.msra.mxu0 0.0
        %1043 = vmatpush.msra.mxu0 0.0
        %1044 = vmatpush.msra.mxu0 0.0
        %1045 = vmatpush.msra.mxu0 0.0
        %1046 = vmatpush.msra.mxu0 %v398
        %1047 = vmatmul.f32.gmra.mxu0 %v1029
        %v1048 = vpop.f32.mrf.mxu0
        %v1049 = vadd.f32 %v1027, %v1048
        %1050 = vdwg.mxu0
        %1052 = vrot.lane.b32.xlu0 %v1049, 33
        %v1053 = vpop.permute.xlu0 %1052
        %vm1055 = vcmask 396552
        %1056 = vst.msk [vmem:[#allocation2 + $0x8] sm:$0xf] %vm1055, %v1053
        %v1057 = vld [vmem:[#allocation2] sm:$0xff]
        %v1058 = vld [vmem:[#allocation2 + $0x8] sm:$0xf]
        %1061 = vst [vmem:[#allocation1] ss:$2 sm:$0xff] %v1057
        %s1062 = scalar_lea.vmem [#allocation1], 16
        %1063 = vst [vmem:[%s1062] ss:$2 sm:$0xff] %v1058
        %v1064 = vld.sshfl [vmem:[#allocation1] sm:$0xff pattern:$0x75316420]
        %v1065 = vld.sshfl [vmem:[#allocation1 + $0x8] sm:$0xff pattern:$0x75316420]
        %v1066 = vld.sshfl [vmem:[#allocation1 + $0x10] sm:$0xff pattern:$0x75316420]
        %1070 = vst [vmem:[#allocation3] sm:$0xf] %v1064
        %1071 = vst [vmem:[#allocation3 + $0x8] sm:$0xf] %v1065
        %vm1072 = vcmask 257024
        %1073 = vst.msk [vmem:[#allocation3 + $0x10] sm:$0xf] %vm1072, %v1066
        %v1074 = vld [vmem:[#allocation2] sm:$0xff]
        %v1075 = vld [vmem:[#allocation2 + $0x8] sm:$0xf]
        %s1078 = scalar_lea.vmem [#allocation1], 1
        %1079 = vst [vmem:[%s1078] ss:$2 sm:$0xff] %v1074
        %s1080 = scalar_lea.vmem [#allocation1], 17
        %1081 = vst [vmem:[%s1080] ss:$2 sm:$0xff] %v1075
        %v1082 = vld.sshfl [vmem:[#allocation1] sm:$0xff pattern:$0x75316420]
        %v1083 = vld.sshfl [vmem:[#allocation1 + $0x8] sm:$0xff pattern:$0x75316420]
        %v1084 = vld.sshfl [vmem:[#allocation1 + $0x10] sm:$0xff pattern:$0x75316420]
        %1085 = vrot.lane.b32.xlu0 %v1082, 127
        %v1086 = vpop.permute.xlu0 %1085
        %1087 = vrot.lane.b32.xlu0 %v1083, 127
        %v1088 = vpop.permute.xlu0 %1087
        %1089 = vrot.lane.b32.xlu0 %v1084, 127
        %v1090 = vpop.permute.xlu0 %1089
        %v1091 = vsel %vm676, %v1086, %v1088
        %v1092 = vsel %vm676, %v1088, %v1090
        %1096 = vst [vmem:[#allocation3] sm:$0xf0] %v1091
        %1097 = vst [vmem:[#allocation3 + $0x8] sm:$0xf0] %v1092
        %vm1098 = vcmask 261124
        %1099 = vst.msk [vmem:[#allocation3 + $0x10] sm:$0xf0] %vm1098, %v1090
        %v1100 = vld [vmem:[#allocation2] sm:$0xff]
        %v1101 = vld [vmem:[#allocation2 + $0x8] sm:$0xf]
        %1104 = vst [vmem:[#allocation1] ss:$2 sm:$0xff] %v1100
        %s1105 = scalar_lea.vmem [#allocation1], 16
        %1106 = vst [vmem:[%s1105] ss:$2 sm:$0xff] %v1101
        %v1107 = vld.sshfl [vmem:[#allocation1] sm:$0xff pattern:$0x75316420]
        %v1108 = vld.sshfl [vmem:[#allocation1 + $0x8] sm:$0xff pattern:$0x75316420]
        %v1109 = vld.sshfl [vmem:[#allocation1 + $0x10] sm:$0xff pattern:$0x75316420]
        %1110 = vrot.lane.b32.xlu0 %v1107, 126
        %v1111 = vpop.permute.xlu0 %1110
        %1112 = vrot.lane.b32.xlu0 %v1108, 126
        %v1113 = vpop.permute.xlu0 %1112
        %1114 = vrot.lane.b32.xlu0 %v1109, 126
        %v1115 = vpop.permute.xlu0 %1114
        %vm1116 = vcmask 1031168
        %v1117 = vsel %vm1116, %v1111, %v1113
        %v1118 = vsel %vm1116, %v1113, %v1115
        %1122 = vst [vmem:[#allocation3 + $0x18] sm:$0xf] %v1117
        %1123 = vst [vmem:[#allocation3 + $0x20] sm:$0xf] %v1118
        %1124 = vst.msk [vmem:[#allocation3 + $0x28] sm:$0xf] %vm1072, %v1115
        %v1125 = vld [vmem:[#allocation2] sm:$0xff]
        %v1126 = vld [vmem:[#allocation2 + $0x8] sm:$0xf]
        %s1129 = scalar_lea.vmem [#allocation1], 1
        %1130 = vst [vmem:[%s1129] ss:$2 sm:$0xff] %v1125
        %s1131 = scalar_lea.vmem [#allocation1], 17
        %1132 = vst [vmem:[%s1131] ss:$2 sm:$0xff] %v1126
        %v1133 = vld.sshfl [vmem:[#allocation1] sm:$0xff pattern:$0x75316420]
        %v1134 = vld.sshfl [vmem:[#allocation1 + $0x8] sm:$0xff pattern:$0x75316420]
        %v1135 = vld.sshfl [vmem:[#allocation1 + $0x10] sm:$0xff pattern:$0x75316420]
        %1136 = vrot.lane.b32.xlu0 %v1133, 110
        %v1137 = vpop.permute.xlu0 %1136
        %1138 = vrot.lane.b32.xlu0 %v1134, 110
        %v1139 = vpop.permute.xlu0 %1138
        %1140 = vrot.lane.b32.xlu0 %v1135, 110
        %v1141 = vpop.permute.xlu0 %1140
        %vm1142 = vcmask 900096
        %v1143 = vsel %vm1142, %v1137, %v1139
        %v1144 = vsel %vm1142, %v1139, %v1141
        %1148 = vst [vmem:[#allocation3 + $0x18] sm:$0xf0] %v1143
        %1149 = vst [vmem:[#allocation3 + $0x20] sm:$0xf0] %v1144
        %1150 = vst.msk [vmem:[#allocation3 + $0x28] sm:$0xf0] %vm1098, %v1141
        %v1151 = vld [vmem:[#allocation2] sm:$0xff]
        %v1152 = vld [vmem:[#allocation2 + $0x8] sm:$0xf]
        %1155 = vst [vmem:[#allocation1] ss:$2 sm:$0xff] %v1151
        %s1156 = scalar_lea.vmem [#allocation1], 16
        %1157 = vst [vmem:[%s1156] ss:$2 sm:$0xff] %v1152
        %v1158 = vld.sshfl [vmem:[#allocation1] sm:$0xff pattern:$0x75316420]
        %v1159 = vld.sshfl [vmem:[#allocation1 + $0x8] sm:$0xff pattern:$0x75316420]
        %v1160 = vld.sshfl [vmem:[#allocation1 + $0x10] sm:$0xff pattern:$0x75316420]
        %1161 = vrot.lane.b32.xlu0 %v1158, 109
        %v1162 = vpop.permute.xlu0 %1161
        %1163 = vrot.lane.b32.xlu0 %v1159, 109
        %v1164 = vpop.permute.xlu0 %1163
        %1165 = vrot.lane.b32.xlu0 %v1160, 109
        %v1166 = vpop.permute.xlu0 %1165
        %vm1167 = vcmask 891904
        %v1168 = vsel %vm1167, %v1162, %v1164
        %v1169 = vsel %vm1167, %v1164, %v1166
        %1173 = vst [vmem:[#allocation3 + $0x30] sm:$0xf] %v1168
        %1174 = vst [vmem:[#allocation3 + $0x38] sm:$0xf] %v1169
        %1175 = vst.msk [vmem:[#allocation3 + $0x40] sm:$0xf] %vm1072, %v1166
        %v1176 = vld [vmem:[#allocation2] sm:$0xff]
        %v1177 = vld [vmem:[#allocation2 + $0x8] sm:$0xf]
        %s1180 = scalar_lea.vmem [#allocation1], 1
        %1181 = vst [vmem:[%s1180] ss:$2 sm:$0xff] %v1176
        %s1182 = scalar_lea.vmem [#allocation1], 17
        %1183 = vst [vmem:[%s1182] ss:$2 sm:$0xff] %v1177
        %v1184 = vld.sshfl [vmem:[#allocation1] sm:$0xff pattern:$0x75316420]
        %v1185 = vld.sshfl [vmem:[#allocation1 + $0x8] sm:$0xff pattern:$0x75316420]
        %v1186 = vld.sshfl [vmem:[#allocation1 + $0x10] sm:$0xff pattern:$0x75316420]
        %1187 = vrot.lane.b32.xlu0 %v1184, 108
        %v1188 = vpop.permute.xlu0 %1187
        %1189 = vrot.lane.b32.xlu0 %v1185, 108
        %v1190 = vpop.permute.xlu0 %1189
        %1191 = vrot.lane.b32.xlu0 %v1186, 108
        %v1192 = vpop.permute.xlu0 %1191
        %vm1193 = vcmask 883712
        %v1194 = vsel %vm1193, %v1188, %v1190
        %v1195 = vsel %vm1193, %v1190, %v1192
        %1199 = vst [vmem:[#allocation3 + $0x30] sm:$0xf0] %v1194
        %1200 = vst [vmem:[#allocation3 + $0x38] sm:$0xf0] %v1195
        %1201 = vst.msk [vmem:[#allocation3 + $0x40] sm:$0xf0] %vm1098, %v1192
        %v1202 = vld [vmem:[#allocation2] sm:$0xff]
        %v1203 = vld [vmem:[#allocation2 + $0x8] sm:$0xf]
        %1206 = vst [vmem:[#allocation1] ss:$2 sm:$0xff] %v1202
        %s1207 = scalar_lea.vmem [#allocation1], 16
        %1208 = vst [vmem:[%s1207] ss:$2 sm:$0xff] %v1203
        %v1209 = vld.sshfl [vmem:[#allocation1] sm:$0xff pattern:$0x75316420]
        %v1210 = vld.sshfl [vmem:[#allocation1 + $0x8] sm:$0xff pattern:$0x75316420]
        %v1211 = vld.sshfl [vmem:[#allocation1 + $0x10] sm:$0xff pattern:$0x75316420]
        %1212 = vrot.lane.b32.xlu0 %v1209, 92
        %v1213 = vpop.permute.xlu0 %1212
        %1214 = vrot.lane.b32.xlu0 %v1210, 92
        %v1215 = vpop.permute.xlu0 %1214
        %1216 = vrot.lane.b32.xlu0 %v1211, 92
        %v1217 = vpop.permute.xlu0 %1216
        %vm1218 = vcmask 752640
        %v1219 = vsel %vm1218, %v1213, %v1215
        %v1220 = vsel %vm1218, %v1215, %v1217
        %1224 = vst [vmem:[#allocation3 + $0x48] sm:$0xf] %v1219
        %1225 = vst [vmem:[#allocation3 + $0x50] sm:$0xf] %v1220
        %1226 = vst.msk [vmem:[#allocation3 + $0x58] sm:$0xf] %vm1072, %v1217
        %v1227 = vld [vmem:[#allocation2] sm:$0xff]
        %v1228 = vld [vmem:[#allocation2 + $0x8] sm:$0xf]
        %s1231 = scalar_lea.vmem [#allocation1], 1
        %1232 = vst [vmem:[%s1231] ss:$2 sm:$0xff] %v1227
        %s1233 = scalar_lea.vmem [#allocation1], 17
        %1234 = vst [vmem:[%s1233] ss:$2 sm:$0xff] %v1228
        %v1235 = vld.sshfl [vmem:[#allocation1] sm:$0xff pattern:$0x75316420]
        %v1236 = vld.sshfl [vmem:[#allocation1 + $0x8] sm:$0xff pattern:$0x75316420]
        %v1237 = vld.sshfl [vmem:[#allocation1 + $0x10] sm:$0xff pattern:$0x75316420]
        %1238 = vrot.lane.b32.xlu0 %v1235, 91
        %v1239 = vpop.permute.xlu0 %1238
        %1240 = vrot.lane.b32.xlu0 %v1236, 91
        %v1241 = vpop.permute.xlu0 %1240
        %1242 = vrot.lane.b32.xlu0 %v1237, 91
        %v1243 = vpop.permute.xlu0 %1242
        %vm1244 = vcmask 744448
        %v1245 = vsel %vm1244, %v1239, %v1241
        %v1246 = vsel %vm1244, %v1241, %v1243
        %1250 = vst [vmem:[#allocation3 + $0x48] sm:$0xf0] %v1245
        %1251 = vst [vmem:[#allocation3 + $0x50] sm:$0xf0] %v1246
        %1252 = vst.msk [vmem:[#allocation3 + $0x58] sm:$0xf0] %vm1098, %v1243
        %v1253 = vld [vmem:[#allocation2] sm:$0xff]
        %v1254 = vld [vmem:[#allocation2 + $0x8] sm:$0xf]
        %1257 = vst [vmem:[#allocation1] ss:$2 sm:$0xff] %v1253
        %s1258 = scalar_lea.vmem [#allocation1], 16
        %1259 = vst [vmem:[%s1258] ss:$2 sm:$0xff] %v1254
        %v1260 = vld.sshfl [vmem:[#allocation1] sm:$0xff pattern:$0x75316420]
        %v1261 = vld.sshfl [vmem:[#allocation1 + $0x8] sm:$0xff pattern:$0x75316420]
        %v1262 = vld.sshfl [vmem:[#allocation1 + $0x10] sm:$0xff pattern:$0x75316420]
        %1263 = vrot.lane.b32.xlu0 %v1260, 90
        %v1264 = vpop.permute.xlu0 %1263
        %1265 = vrot.lane.b32.xlu0 %v1261, 90
        %v1266 = vpop.permute.xlu0 %1265
        %1267 = vrot.lane.b32.xlu0 %v1262, 90
        %v1268 = vpop.permute.xlu0 %1267
        %vm1269 = vcmask 736256
        %v1270 = vsel %vm1269, %v1264, %v1266
        %v1271 = vsel %vm1269, %v1266, %v1268
        %1275 = vst [vmem:[#allocation3 + $0x60] sm:$0xf] %v1270
        %1276 = vst [vmem:[#allocation3 + $0x68] sm:$0xf] %v1271
        %1277 = vst.msk [vmem:[#allocation3 + $0x70] sm:$0xf] %vm1072, %v1268
        %v1278 = vld [vmem:[#allocation9] sm:$0xff]
        %v1279 = vld [vmem:[#allocation9 + $0x8] sm:$0xff]
        %v1280 = vld [vmem:[#allocation3] sm:$0xff]
        %v1281 = vld [vmem:[#allocation3 + $0x8] sm:$0xff]
        %v1282 = vld [vmem:[#allocation3 + $0x10] sm:$0xff]
        %v1283 = vld [vmem:[#allocation3 + $0x18] sm:$0xff]
        %v1284 = vld [vmem:[#allocation3 + $0x20] sm:$0xff]
        %v1285 = vld [vmem:[#allocation3 + $0x28] sm:$0xff]
        %v1286 = vld [vmem:[#allocation3 + $0x30] sm:$0xff]
        %v1287 = vld [vmem:[#allocation3 + $0x38] sm:$0xff]
        %v1288 = vld [vmem:[#allocation3 + $0x40] sm:$0xff]
        %v1289 = vld [vmem:[#allocation3 + $0x48] sm:$0xff]
        %v1290 = vld [vmem:[#allocation3 + $0x50] sm:$0xff]
        %v1291 = vld [vmem:[#allocation3 + $0x58] sm:$0xff]
        %v1292 = vld [vmem:[#allocation3 + $0x60] sm:$0xf]
        %v1293 = vld [vmem:[#allocation3 + $0x68] sm:$0xf]
        %v1294 = vld [vmem:[#allocation3 + $0x70] sm:$0xf]
        %vm1295 = vcmask 293888
        %v1297 = vsel %vm1295, %v1278, 0
        %v1300 = vsel %vm1295, %v1279, 0
        %vm1302 = vcmask 1043456
        %v1304 = vsel %vm1302, %v1292, 0
        %v1307 = vsel %vm1302, %v1293, 0
        %v1310 = vsel %vm1302, %v1294, 0
        %1312 = vmatpush.msra.mxu0 0.0
        %1313 = vmatpush.msra.mxu0 0.0
        %1314 = vmatpush.msra.mxu0 0.0
        %1315 = vmatpush.msra.mxu0 0.0
        %1316 = vmatpush.msra.mxu0 0.0
        %1317 = vmatpush.msra.mxu0 0.0
        %1318 = vmatpush.msra.mxu0 0.0
        %1319 = vmatpush.msra.mxu0 0.0
        %1320 = vmatpush.msra.mxu0 0.0
        %1321 = vmatpush.msra.mxu0 0.0
        %1322 = vmatpush.msra.mxu0 0.0
        %1323 = vmatpush.msra.mxu0 %v1304
        %1324 = vmatpush.msra.mxu0 %v1289
        %1325 = vmatpush.msra.mxu0 %v1286
        %1326 = vmatpush.msra.mxu0 %v1283
        %1327 = vmatpush.msra.mxu0 %v1280
        %1328 = vmatmul.f32.gmra.mxu0 %v1297
        %v1329 = vpop.f32.mrf.mxu0
        %v1330 = vadd.f32 0.0, %v1329
        %1331 = vmatmul.f32.gmra.mxu0 %v1300
        %v1332 = vpop.f32.mrf.mxu0
        %v1333 = vadd.f32 0.0, %v1332
        %1334 = vdwg.mxu0
        %1335 = vmatpush.msra.mxu0 0.0
        %1336 = vmatpush.msra.mxu0 0.0
        %1337 = vmatpush.msra.mxu0 0.0
        %1338 = vmatpush.msra.mxu0 0.0
        %1339 = vmatpush.msra.mxu0 0.0
        %1340 = vmatpush.msra.mxu0 0.0
        %1341 = vmatpush.msra.mxu0 0.0
        %1342 = vmatpush.msra.mxu0 0.0
        %1343 = vmatpush.msra.mxu0 0.0
        %1344 = vmatpush.msra.mxu0 0.0
        %1345 = vmatpush.msra.mxu0 0.0
        %1346 = vmatpush.msra.mxu0 %v1307
        %1347 = vmatpush.msra.mxu0 %v1290
        %1348 = vmatpush.msra.mxu0 %v1287
        %1349 = vmatpush.msra.mxu0 %v1284
        %1350 = vmatpush.msra.mxu0 %v1281
        %1351 = vmatmul.f32.gmra.mxu0 %v1297
        %v1352 = vpop.f32.mrf.mxu0
        %v1353 = vadd.f32 0.0, %v1352
        %1354 = vmatmul.f32.gmra.mxu0 %v1300
        %v1355 = vpop.f32.mrf.mxu0
        %v1356 = vadd.f32 0.0, %v1355
        %1357 = vdwg.mxu0
        %1358 = vmatpush.msra.mxu0 0.0
        %1359 = vmatpush.msra.mxu0 0.0
        %1360 = vmatpush.msra.mxu0 0.0
        %1361 = vmatpush.msra.mxu0 0.0
        %1362 = vmatpush.msra.mxu0 0.0
        %1363 = vmatpush.msra.mxu0 0.0
        %1364 = vmatpush.msra.mxu0 0.0
        %1365 = vmatpush.msra.mxu0 0.0
        %1366 = vmatpush.msra.mxu0 0.0
        %1367 = vmatpush.msra.mxu0 0.0
        %1368 = vmatpush.msra.mxu0 0.0
        %1369 = vmatpush.msra.mxu0 %v1310
        %1370 = vmatpush.msra.mxu0 %v1291
        %1371 = vmatpush.msra.mxu0 %v1288
        %1372 = vmatpush.msra.mxu0 %v1285
        %1373 = vmatpush.msra.mxu0 %v1282
        %1374 = vmatmul.f32.gmra.mxu0 %v1297
        %v1375 = vpop.f32.mrf.mxu0
        %v1376 = vadd.f32 0.0, %v1375
        %1377 = vmatmul.f32.gmra.mxu0 %v1300
        %v1378 = vpop.f32.mrf.mxu0
        %v1379 = vadd.f32 0.0, %v1378
        %1380 = vdwg.mxu0
        %v1381 = vlaneseq
        %v1382 = vand.u32 %v1381, 127
        %v1383 = vadd.s32 %v1382, 128
        %v1384 = vadd.s32 %v1382, 256
        %v1385 = vcvt.s32.f32 %v1382
        %v1386 = vcvt.s32.f32 %v1383
        %v1387 = vcvt.s32.f32 %v1384
        %v1388 = vadd.f32 %v1385, 0.5
        %v1389 = vadd.f32 %v1386, 0.5
        %v1390 = vadd.f32 %v1387, 0.5
        %v1391 = vmul.f32 %v1388, 0.055555556
        %v1392 = vmul.f32 %v1389, 0.055555556
        %v1393 = vmul.f32 %v1390, 0.055555556
        %v1394 = vfloor.f32 %v1391
        %v1395 = vfloor.f32 %v1392
        %v1396 = vfloor.f32 %v1393
        %v1397 = vmul.f32 %v1394, 18.0
        %v1398 = vmul.f32 %v1395, 18.0
        %v1399 = vmul.f32 %v1396, 18.0
        %v1400 = vsub.f32 %v1385, %v1397
        %v1401 = vsub.f32 %v1386, %v1398
        %v1402 = vsub.f32 %v1387, %v1399
        %vm1403 = vcmp.lt.f32.partialorder %v1400, 15.5
        %vm1404 = vcmp.lt.f32.partialorder %v1401, 15.5
        %vm1405 = vcmp.lt.f32.partialorder %v1402, 15.5
        %v1406 = vsel %vm1403, 1, 0
        %v1407 = vsel %vm1404, 1, 0
        %v1408 = vsel %vm1405, 1, 0
        %v1409 = vcvt.s32.f32 %v1406
        %v1410 = vcvt.s32.f32 %v1407
        %v1411 = vcvt.s32.f32 %v1408
        %v1412 = vmul.f32 %v1330, %v1409
        %v1413 = vmul.f32 %v1353, %v1410
        %v1414 = vmul.f32 %v1376, %v1411
        %v1415 = vmul.f32 %v1333, %v1409
        %v1416 = vmul.f32 %v1356, %v1410
        %v1417 = vmul.f32 %v1379, %v1411
        %v1418 = vadd.f32 %v1412, %v1413
        %vm1419 = vcmask 261120
        %v1420 = vsel %vm1419, %v1414, 0.0
        %v1421 = vadd.f32 %v1418, %v1420
        %1422 = vadd.xlane.f32.xlu0 %v1421
        %v1423 = vpop.xlane.xlu0 %1422
        %v1424 = vadd.f32 %v1415, %v1416
        %v1425 = vsel %vm1419, %v1417, 0.0
        %v1426 = vadd.f32 %v1424, %v1425
        %1427 = vadd.xlane.f32.xlu0 %v1426
        %v1428 = vpop.xlane.xlu0 %1427
        %v1429 = vmul.f32 %v1412, %v1412
        %v1430 = vmul.f32 %v1413, %v1413
        %v1431 = vmul.f32 %v1414, %v1414
        %v1432 = vmul.f32 %v1415, %v1415
        %v1433 = vmul.f32 %v1416, %v1416
        %v1434 = vmul.f32 %v1417, %v1417
        %v1435 = vadd.f32 %v1429, %v1430
        %v1436 = vsel %vm1419, %v1431, 0.0
        %v1437 = vadd.f32 %v1435, %v1436
        %1438 = vadd.xlane.f32.xlu0 %v1437
        %v1439 = vpop.xlane.xlu0 %1438
        %v1440 = vadd.f32 %v1432, %v1433
        %v1441 = vsel %vm1419, %v1434, 0.0
        %v1442 = vadd.f32 %v1440, %v1441
        %1443 = vadd.xlane.f32.xlu0 %v1442
        %v1444 = vpop.xlane.xlu0 %1443
        %vm1445 = vcmask 7168
        %v1446 = vsel %vm1445, %v1423, %v1439
        %v1447 = vsel %vm1445, %v1428, %v1444
        %vm1448 = vcmask 15360
        %1449 = vst.msk [vmem:[%s341] sm:$0xff] %vm1448, %v1446
        %1450 = vst.msk [vmem:[%s341 + $0x8] sm:$0xff] %vm1448, %v1447
        %p1451 = scmp.lt.s32.totalorder %s24, 1
        %s1452 = scalar_select %p1451, %s24, 1
        %s1453 = smul.addr %s1452, 2
        %s1454 = smul.addr %s1453, 8
        %s1455 = scalar_lea.vmem %s6, %s1454
        // Predicated region
        $region61: #{tpu_custom_call.1} parent=43 // pred_check
          %p1456 = pneg %p178
        $region62: #{tpu_custom_call.1} parent=43 // pred_check_branch
          %1458 = sbr.rel (%p1456) target = $region64
        $region63: #{tpu_custom_call.1} parent=43 // pred_region
          _
        $region64: #{tpu_custom_call.1} parent=43 // pred_fallthru
          _
      $region44: #{tpu_custom_call.1} parent=5 // pred_fallthru
        _
      %p1459 = scmp.le.s32.totalorder 2, %s19
      // Predicated region
      $region65: #{tpu_custom_call.1} parent=5 // pred_check
        %p1460 = pneg %p1459
      $region66: #{tpu_custom_call.1} parent=5 // pred_check_branch
        %1462 = sbr.rel (%p1460) target = $region68
      $region67: #{tpu_custom_call.1} parent=5 // pred_region
        %s1463 = ssub.s32 %s19, 2
        // Predicated region
        $region69: #{tpu_custom_call.1} parent=67 // pred_check
          %p1464 = pneg %p184
        $region70: #{tpu_custom_call.1} parent=67 // pred_check_branch
          %1466 = sbr.rel (%p1464) target = $region72
        $region71: #{tpu_custom_call.1} parent=67 // pred_region
          %p1467 = scmp.lt.s32.totalorder %s25, 1
          %s1468 = scalar_select %p1467, %s25, 1
          %s1469 = smul.addr %s1468, 2
          %s1470 = smul.addr %s1469, 8
          %s1471 = scalar_lea.vmem %s6, %s1470
        $region72: #{tpu_custom_call.1} parent=67 // pred_fallthru
          _
      $region68: #{tpu_custom_call.1} parent=5 // pred_fallthru
        _
    $region6: #{tpu_custom_call.1} parent=1 // loop_footer
      %s23 = sadd.s32 1, %s19
    $region7: #{tpu_custom_call.1} parent=1 // loop_footer_branch
      %18 = sbr.rel target = $region3
    $region8: #{tpu_custom_call.1} parent=1 // loop_exit
      _
    %1472 = vsyncpa [#allocation5], 1
    %s1473 = scalar_lea.sflag [#allocation5], 1
    %1474 = vsyncpa %s1473, 1
    %1475 = vsyncpa [#allocation7], 1
    %s1476 = scalar_lea.sflag [#allocation7], 1
    %1477 = vsyncpa %s1476, 1
    %1478 = vsyncpa [#allocation10], 1

</llo_original>
